<compile_context>
chip_gen: v7x
topology: tpu7x:2x2x1
jax: 0.10.0
libtpu: 0.0.40
codegen_flags: <defaults>
</compile_context>

<pallas_src>
import jax
import jax.numpy as jnp
from jax.experimental import pallas as pl
from jax.experimental.pallas import tpu as pltpu

# ---------------- small, Phi3Small-consistent config ----------------
HIDDEN = 128
NUM_HEADS = 4
NUM_KV_HEADS = 2
HEAD_DIM = HIDDEN // NUM_HEADS               # 32
HALF = HEAD_DIM // 2                         # 16 (rotary half)
NUM_Q_PER_KV = NUM_HEADS // NUM_KV_HEADS     # 2
INTERMEDIATE = 256
BATCH = 2
SEQ = 16
EPS = 1e-5                                   # layer_norm_epsilon
ROPE_BASE = 10000.0                          # rope_embedding_base
ROPE_POSITION_SCALE = 1.0                    # rope_position_scale (linear scaling)
MUP_ATTN_MULTIPLIER = 1.0                    # mup_use_scaling=True
SCALE = MUP_ATTN_MULTIPLIER / HEAD_DIM       # 1 / (head_dim / mup_attn_multiplier)

Q_SIZE = NUM_HEADS * HEAD_DIM                # 128
KV_SIZE = NUM_KV_HEADS * HEAD_DIM            # 64
QKV_OUT = Q_SIZE + 2 * KV_SIZE               # 256
NEG_INF = -1e30


# ---------------- fused decoder-layer kernel ----------------
def _phi3_decoder_kernel(x_ref, ln1w_ref, ln1b_ref, qkvw_ref, qkvb_ref,
                         cosq_ref, sinq_ref, cosk_ref, sink_ref, bias_ref,
                         ow_ref, ob_ref, ln2w_ref, ln2b_ref,
                         upw_ref, upb_ref, downw_ref, downb_ref,
                         out_ref, kblk_ref, vblk_ref):
    x = x_ref[0]                                              # (T, H) f32
    T = x.shape[0]

    def layernorm(v, w, b):
        mean = jnp.mean(v, axis=-1, keepdims=True)
        c = v - mean
        var = jnp.mean(c * c, axis=-1, keepdims=True)         # biased, like nn.LayerNorm
        return c * jax.lax.rsqrt(var + EPS) * w + b

    def bf16_dot(a, w_ref_, bias_row):                        # bf16 MXU, f32 accum
        return jnp.dot(a.astype(jnp.bfloat16), w_ref_[...],
                       preferred_element_type=jnp.float32) + bias_row

    # --- LN1 + fused qkv projection (bias epilogue) ---
    h = layernorm(x, ln1w_ref[...], ln1b_ref[...])
    qkv = bf16_dot(h, qkvw_ref, qkvb_ref[...])                # (T, 256), [Q|K|V] layout
    q = qkv[:, :Q_SIZE]                                       # (T, 128)  halves-separated
    k = qkv[:, Q_SIZE:Q_SIZE + KV_SIZE]                       # (T, 64)   halves-separated
    v = qkv[:, Q_SIZE + KV_SIZE:]                             # (T, 64)   head-contiguous

    # --- RoPE on full slabs: rotate-half == roll by half-width (XLU),
    #     negation folded into the precomputed sin tables ---
    q_rot = q * cosq_ref[...] + pltpu.roll(q, Q_SIZE // 2, axis=1) * sinq_ref[...]
    k_rot = k * cosk_ref[...] + pltpu.roll(k, KV_SIZE // 2, axis=1) * sink_ref[...]

    qb = q_rot.astype(jnp.bfloat16)                           # cast once per tensor
    kb = k_rot.astype(jnp.bfloat16)
    vb = v.astype(jnp.bfloat16)

    # --- build block-diagonal K (4T,128) and [V | ones] (4T,256) in VMEM scratch ---
    kblk_ref[...] = jnp.zeros_like(kblk_ref)
    vblk_ref[...] = jnp.zeros_like(vblk_ref)
    ones_tile = jnp.ones((T, HEAD_DIM), jnp.bfloat16)
    qh_off = Q_SIZE // 2                                      # start of q second halves
    kh_off = KV_SIZE // 2                                     # start of k second halves
    for hidx in range(NUM_HEADS):
        g = hidx // NUM_Q_PER_KV                              # kv group of this q head
        r0, r1 = hidx * T, (hidx + 1) * T
        # K columns must line up with q lanes ([all fh | all sh] layout).
        kblk_ref[r0:r1, hidx * HALF:(hidx + 1) * HALF] = kb[:, g * HALF:(g + 1) * HALF]
        kblk_ref[r0:r1, qh_off + hidx * HALF:qh_off + (hidx + 1) * HALF] = \
            kb[:, kh_off + g * HALF:kh_off + (g + 1) * HALF]
        # V block (head-contiguous output lanes) + ones block for the denominator.
        vblk_ref[r0:r1, hidx * HEAD_DIM:(hidx + 1) * HEAD_DIM] = \
            vb[:, g * HEAD_DIM:(g + 1) * HEAD_DIM]
        vblk_ref[r0:r1, Q_SIZE + hidx * HEAD_DIM:Q_SIZE + (hidx + 1) * HEAD_DIM] = ones_tile

    # --- all-head scores in ONE full-depth matmul: (T,128) x (128,4T) -> (T,4T) ---
    s = jax.lax.dot_general(qb, kblk_ref[...], (((1,), (1,)), ((), ())),
                            preferred_element_type=jnp.float32)
    s = s * SCALE + bias_ref[...]                             # precomputed causal bias

    # --- batched softmax over the whole (T, 4T) tile ---
    # Global row max >= each per-head max, so exp stays stable; per-head
    # denominators come back lane-broadcast from the ones-blocks matmul.
    m = jnp.max(s, axis=-1, keepdims=True)
    p = jnp.exp(s - m).astype(jnp.bfloat16)                   # (T, 4T)

    av = jnp.dot(p, vblk_ref[...], preferred_element_type=jnp.float32)   # (T, 2*128)
    attn = av[:, :Q_SIZE] * pl.reciprocal(av[:, Q_SIZE:], approx=True)   # (T, 128)

    # --- o_proj + residual (epilogue) ---
    h1 = x + bf16_dot(attn, ow_ref, ob_ref[...])

    # --- LN2 + up_proj ([gelu-half | linear-half] column layout) ---
    h2 = layernorm(h1, ln2w_ref[...], ln2b_ref[...])
    gate_up = bf16_dot(h2, upw_ref, upb_ref[...])             # (T, 2*I)
    a_gelu = gate_up[:, :INTERMEDIATE]
    a_lin = gate_up[:, INTERMEDIATE:]
    # gegelu (limit=None path): quick_gelu via EUP exp + approx reciprocal (no VALU div)
    e = jnp.exp(-1.702 * a_gelu)
    act = a_gelu * pl.reciprocal(1.0 + e, approx=True) * (a_lin + 1.0)

    # --- down_proj + residual (epilogue) ---
    out_ref[0] = h1 + bf16_dot(act, downw_ref, downb_ref[...])


# ---------------- glue ----------------
def rope_tables(positions):
    inv_freq = 1.0 / (ROPE_BASE ** (jnp.arange(0, HEAD_DIM, 2, dtype=jnp.float32)
                                    / HEAD_DIM))
    t = positions.astype(jnp.float32) / ROPE_POSITION_SCALE
    freqs = jnp.outer(t, inv_freq)                            # (T, HALF)
    return jnp.cos(freqs), jnp.sin(freqs)


def decoder_layer(positions, hidden_states, kp):
    B, T, H = hidden_states.shape
    cos_h, sin_h = rope_tables(positions)                     # (T, HALF)

    # cos / signed-sin tables matching the halves-separated q/k lane layout
    cos_q = jnp.tile(cos_h, (1, Q_SIZE // HALF))                              # (T, 128)
    sin_q = jnp.concatenate([-jnp.tile(sin_h, (1, NUM_HEADS)),
                             jnp.tile(sin_h, (1, NUM_HEADS))], axis=-1)       # (T, 128)
    cos_k = jnp.tile(cos_h, (1, KV_SIZE // HALF))                             # (T, 64)
    sin_k = jnp.concatenate([-jnp.tile(sin_h, (1, NUM_KV_HEADS)),
                             jnp.tile(sin_h, (1, NUM_KV_HEADS))], axis=-1)    # (T, 64)

    # additive causal bias for the batched (T, 4T) score tile, built once here
    causal = jnp.arange(T)[:, None] >= jnp.arange(T)[None, :]
    attn_bias = jnp.tile(jnp.where(causal, 0.0, NEG_INF).astype(jnp.float32),
                         (1, NUM_HEADS))                                      # (T, 4T)

    operands = [hidden_states, kp["ln1_w"], kp["ln1_b"], kp["qkv_w"], kp["qkv_b"],
                cos_q, sin_q, cos_k, sin_k, attn_bias,
                kp["o_w"], kp["o_b"], kp["ln2_w"], kp["ln2_b"],
                kp["up_w"], kp["up_b"], kp["down_w"], kp["down_b"]]

    def rep_spec(shape):          # weights / tables: constant block -> stay resident
        return pl.BlockSpec(shape, lambda b: (0,) * len(shape))

    in_specs = ([pl.BlockSpec((1, T, H), lambda b: (b, 0, 0))]
                + [rep_spec(op.shape) for op in operands[1:]])

    return pl.pallas_call(
        _phi3_decoder_kernel,
        out_shape=jax.ShapeDtypeStruct((B, T, H), jnp.float32),
        grid=(B,),
        in_specs=in_specs,
        out_specs=pl.BlockSpec((1, T, H), lambda b: (b, 0, 0)),
        scratch_shapes=[pltpu.VMEM((NUM_HEADS * T, Q_SIZE), jnp.bfloat16),       # K blkdiag
                        pltpu.VMEM((NUM_HEADS * T, 2 * Q_SIZE), jnp.bfloat16)],  # [V|1] blkdiag
        compiler_params=pltpu.CompilerParams(dimension_semantics=("parallel",)),
    )(*operands)


def init_params(key):
    """Canonical (torch-layout) parameters: qkv output interleaved per kv group,
    up_proj output interleaved gelu/linear (as the HF checkpoint stores them)."""
    ks = jax.random.split(key, 12)
    n = lambda k, shape, s=0.02: s * jax.random.normal(k, shape, jnp.float32)
    return {
        "ln1_w": 1.0 + n(ks[0], (HIDDEN,), 0.1),
        "ln1_b": n(ks[1], (HIDDEN,), 0.01),
        "qkv_w": n(ks[2], (HIDDEN, QKV_OUT)),
        "qkv_b": n(ks[3], (QKV_OUT,)),
        "o_w": n(ks[4], (HIDDEN, HIDDEN)),
        "o_b": n(ks[5], (HIDDEN,)),
        "ln2_w": 1.0 + n(ks[6], (HIDDEN,), 0.1),
        "ln2_b": n(ks[7], (HIDDEN,), 0.01),
        "up_w": n(ks[8], (HIDDEN, 2 * INTERMEDIATE)),
        "up_b": n(ks[9], (2 * INTERMEDIATE,)),
        "down_w": n(ks[10], (INTERMEDIATE, HIDDEN)),
        "down_b": n(ks[11], (HIDDEN,)),
    }


def prepare_params(p):
    """One-time layout prep for the fused kernel:
    - qkv columns permuted from per-kv-group interleave to
      [q first-halves | q second-halves | k first-halves | k second-halves | v]
      so rotate-half is a single pltpu.roll on the q / k slabs
    - up_proj columns permuted from gelu/linear interleave to [gelu | linear]
    - matmul weights cast to bf16 (f32 accumulation in-kernel)
    - 1D vectors reshaped to (1, N) rows."""
    idx = jnp.arange(QKV_OUT).reshape(NUM_KV_HEADS, NUM_Q_PER_KV + 2, HEAD_DIM)
    q_fh = idx[:, :NUM_Q_PER_KV, :HALF].reshape(-1)            # heads 0..3 first halves
    q_sh = idx[:, :NUM_Q_PER_KV, HALF:].reshape(-1)            # heads 0..3 second halves
    k_fh = idx[:, NUM_Q_PER_KV, :HALF].reshape(-1)             # kv heads first halves
    k_sh = idx[:, NUM_Q_PER_KV, HALF:].reshape(-1)             # kv heads second halves
    v_all = idx[:, NUM_Q_PER_KV + 1, :].reshape(-1)            # kv heads, head-contiguous
    qkv_perm = jnp.concatenate([q_fh, q_sh, k_fh, k_sh, v_all])
    up_perm = jnp.concatenate([jnp.arange(0, 2 * INTERMEDIATE, 2),
                               jnp.arange(1, 2 * INTERMEDIATE, 2)])
    bf = jnp.bfloat16
    return {
        "ln1_w": p["ln1_w"].reshape(1, -1),
        "ln1_b": p["ln1_b"].reshape(1, -1),
        "qkv_w": p["qkv_w"][:, qkv_perm].astype(bf),
        "qkv_b": p["qkv_b"][qkv_perm].reshape(1, -1),
        "o_w": p["o_w"].astype(bf),
        "o_b": p["o_b"].reshape(1, -1),
        "ln2_w": p["ln2_w"].reshape(1, -1),
        "ln2_b": p["ln2_b"].reshape(1, -1),
        "up_w": p["up_w"][:, up_perm].astype(bf),
        "up_b": p["up_b"][up_perm].reshape(1, -1),
        "down_w": p["down_w"].astype(bf),
        "down_b": p["down_b"].reshape(1, -1),
    }


# ---------------- pure-JAX reference (torch semantics, f32, highest precision) ----
def reference_decoder_layer(positions, x, p):
    HIGH = jax.lax.Precision.HIGHEST
    T = x.shape[0]

    def ln(v, w, b):
        mean = jnp.mean(v, -1, keepdims=True)
        c = v - mean
        var = jnp.mean(c * c, -1, keepdims=True)
        return c * jax.lax.rsqrt(var + EPS) * w + b

    h = ln(x, p["ln1_w"], p["ln1_b"])
    qkv = jnp.dot(h, p["qkv_w"], precision=HIGH) + p["qkv_b"]
    qkv = qkv.reshape(T, NUM_KV_HEADS, NUM_Q_PER_KV + 2, HEAD_DIM)
    q = qkv[:, :, :NUM_Q_PER_KV, :].reshape(T, NUM_HEADS, HEAD_DIM)
    k = qkv[:, :, NUM_Q_PER_KV, :]
    v = qkv[:, :, NUM_Q_PER_KV + 1, :]

    cos, sin = rope_tables(positions)

    def rope(xh):                                               # (T, n, D)
        c = cos[:, None, :]
        s = sin[:, None, :]
        x1, x2 = xh[..., :HALF], xh[..., HALF:]
        return jnp.concatenate([x1 * c - x2 * s, x2 * c + x1 * s], axis=-1)

    q = rope(q)
    k = rope(k)
    k = jnp.repeat(k, NUM_Q_PER_KV, axis=1)                     # GQA expand
    v = jnp.repeat(v, NUM_Q_PER_KV, axis=1)

    s = jnp.einsum('tnd,snd->nts', q, k, precision=HIGH) * SCALE
    row = jnp.arange(T)[:, None]
    col = jnp.arange(T)[None, :]
    s = jnp.where(col <= row, s, NEG_INF)
    pattn = jax.nn.softmax(s, axis=-1)
    o = jnp.einsum('nts,snd->tnd', pattn, v, precision=HIGH).reshape(T, HIDDEN)

    h1 = x + jnp.dot(o, p["o_w"], precision=HIGH) + p["o_b"]
    h2 = ln(h1, p["ln2_w"], p["ln2_b"])
    gate_up = jnp.dot(h2, p["up_w"], precision=HIGH) + p["up_b"]
    a_gelu = gate_up[:, 0::2]
    a_lin = gate_up[:, 1::2]
    act = a_gelu * jax.nn.sigmoid(1.702 * a_gelu) * (a_lin + 1.0)
    return h1 + jnp.dot(act, p["down_w"], precision=HIGH) + p["down_b"]


if __name__ == "__main__":
    key = jax.random.PRNGKey(0)
    k_param, k_x = jax.random.split(key)
    params = init_params(k_param)
    kernel_params = prepare_params(params)

    hidden_states = jax.random.normal(k_x, (BATCH, SEQ, HIDDEN), jnp.float32)
    positions = jnp.arange(SEQ, dtype=jnp.int32)

    out = jax.jit(decoder_layer)(positions, hidden_states, kernel_params)
    out = jax.block_until_ready(out)

    assert out.shape == (BATCH, SEQ, HIDDEN)
    assert bool(jnp.all(jnp.isfinite(out)))

    ref = jax.vmap(lambda x: reference_decoder_layer(positions, x, params))(hidden_states)
    max_err = float(jnp.max(jnp.abs(out - ref)))
    assert max_err < 3e-2, f"max abs error vs reference: {max_err}"

    print("KERNEL_OK")
</pallas_src>

<mosaic_0001>
module attributes {stable_mosaic.version = 11 : i64} {
  func.func @_phi3_decoder_kernel(%arg0: i32, %arg1: memref<1x16x128xf32, #tpu.memory_space<vmem>>, %arg2: memref<1x128xf32, #tpu.memory_space<vmem>>, %arg3: memref<1x128xf32, #tpu.memory_space<vmem>>, %arg4: memref<128x256xbf16, #tpu.memory_space<vmem>>, %arg5: memref<1x256xf32, #tpu.memory_space<vmem>>, %arg6: memref<16x128xf32, #tpu.memory_space<vmem>>, %arg7: memref<16x128xf32, #tpu.memory_space<vmem>>, %arg8: memref<16x64xf32, #tpu.memory_space<vmem>>, %arg9: memref<16x64xf32, #tpu.memory_space<vmem>>, %arg10: memref<16x64xf32, #tpu.memory_space<vmem>>, %arg11: memref<128x128xbf16, #tpu.memory_space<vmem>>, %arg12: memref<1x128xf32, #tpu.memory_space<vmem>>, %arg13: memref<1x128xf32, #tpu.memory_space<vmem>>, %arg14: memref<1x128xf32, #tpu.memory_space<vmem>>, %arg15: memref<128x512xbf16, #tpu.memory_space<vmem>>, %arg16: memref<1x512xf32, #tpu.memory_space<vmem>>, %arg17: memref<256x128xbf16, #tpu.memory_space<vmem>>, %arg18: memref<1x128xf32, #tpu.memory_space<vmem>>, %arg19: memref<1x16x128xf32, #tpu.memory_space<vmem>>, %arg20: memref<64x128xbf16, #tpu.memory_space<vmem>>, %arg21: memref<64x256xbf16, #tpu.memory_space<vmem>>) attributes {dimension_semantics = [#tpu.dimension_semantics<parallel>], iteration_bounds = array<i64: 2>, scalar_prefetch = 0 : i64, scratch_operands = 2 : i64, tpu.core_type = #tpu.core_type<tc>, window_params = [{transform_indices = @transform_0, window_bounds = array<i64: 1, 16, 128>}, {pipeline_mode = #tpu.pipeline_mode<synchronous>, transform_indices = @transform_1, window_bounds = array<i64: 1, 128>}, {pipeline_mode = #tpu.pipeline_mode<synchronous>, transform_indices = @transform_2, window_bounds = array<i64: 1, 128>}, {pipeline_mode = #tpu.pipeline_mode<synchronous>, transform_indices = @transform_3, window_bounds = array<i64: 128, 256>}, {pipeline_mode = #tpu.pipeline_mode<synchronous>, transform_indices = @transform_4, window_bounds = array<i64: 1, 256>}, {pipeline_mode = #tpu.pipeline_mode<synchronous>, transform_indices = @transform_5, window_bounds = array<i64: 16, 128>}, {pipeline_mode = #tpu.pipeline_mode<synchronous>, transform_indices = @transform_6, window_bounds = array<i64: 16, 128>}, {pipeline_mode = #tpu.pipeline_mode<synchronous>, transform_indices = @transform_7, window_bounds = array<i64: 16, 64>}, {pipeline_mode = #tpu.pipeline_mode<synchronous>, transform_indices = @transform_8, window_bounds = array<i64: 16, 64>}, {pipeline_mode = #tpu.pipeline_mode<synchronous>, transform_indices = @transform_9, window_bounds = array<i64: 16, 64>}, {pipeline_mode = #tpu.pipeline_mode<synchronous>, transform_indices = @transform_10, window_bounds = array<i64: 128, 128>}, {pipeline_mode = #tpu.pipeline_mode<synchronous>, transform_indices = @transform_11, window_bounds = array<i64: 1, 128>}, {pipeline_mode = #tpu.pipeline_mode<synchronous>, transform_indices = @transform_12, window_bounds = array<i64: 1, 128>}, {pipeline_mode = #tpu.pipeline_mode<synchronous>, transform_indices = @transform_13, window_bounds = array<i64: 1, 128>}, {pipeline_mode = #tpu.pipeline_mode<synchronous>, transform_indices = @transform_14, window_bounds = array<i64: 128, 512>}, {pipeline_mode = #tpu.pipeline_mode<synchronous>, transform_indices = @transform_15, window_bounds = array<i64: 1, 512>}, {pipeline_mode = #tpu.pipeline_mode<synchronous>, transform_indices = @transform_16, window_bounds = array<i64: 256, 128>}, {pipeline_mode = #tpu.pipeline_mode<synchronous>, transform_indices = @transform_17, window_bounds = array<i64: 1, 128>}, {transform_indices = @transform_18, window_bounds = array<i64: 1, 16, 128>}]} {
    %c0 = arith.constant 0 : index
    %c0_0 = arith.constant 0 : index
    %c0_1 = arith.constant 0 : index
    %0 = vector.load %arg1[%c0, %c0_0, %c0_1] : memref<1x16x128xf32, #tpu.memory_space<vmem>>, vector<1x16x128xf32>
    %1 = vector.shape_cast %0 : vector<1x16x128xf32> to vector<16x128xf32>
    %c0_2 = arith.constant 0 : index
    %c0_3 = arith.constant 0 : index
    %2 = vector.load %arg2[%c0_2, %c0_3] : memref<1x128xf32, #tpu.memory_space<vmem>>, vector<1x128xf32>
    %c0_4 = arith.constant 0 : index
    %c0_5 = arith.constant 0 : index
    %3 = vector.load %arg3[%c0_4, %c0_5] : memref<1x128xf32, #tpu.memory_space<vmem>>, vector<1x128xf32>
    %cst = arith.constant dense<0.000000e+00> : vector<16xf32>
    %4 = vector.multi_reduction <add>, %1, %cst [1] : vector<16x128xf32> to vector<16xf32>
    %5 = vector.shape_cast %4 : vector<16xf32> to vector<16x1xf32>
    %cst_6 = arith.constant 1.280000e+02 : f32
    %6 = vector.broadcast %cst_6 : f32 to vector<16x1xf32>
    %7 = arith.divf %5, %6 : vector<16x1xf32>
    %8 = vector.broadcast %7 : vector<16x1xf32> to vector<16x128xf32>
    %9 = arith.subf %1, %8 : vector<16x128xf32>
    %10 = arith.mulf %9, %9 : vector<16x128xf32>
    %cst_7 = arith.constant dense<0.000000e+00> : vector<16xf32>
    %11 = vector.multi_reduction <add>, %10, %cst_7 [1] : vector<16x128xf32> to vector<16xf32>
    %12 = vector.shape_cast %11 : vector<16xf32> to vector<16x1xf32>
    %cst_8 = arith.constant 1.280000e+02 : f32
    %13 = vector.broadcast %cst_8 : f32 to vector<16x1xf32>
    %14 = arith.divf %12, %13 : vector<16x1xf32>
    %cst_9 = arith.constant 9.99999974E-6 : f32
    %15 = vector.broadcast %cst_9 : f32 to vector<16x1xf32>
    %16 = arith.addf %14, %15 : vector<16x1xf32>
    %17 = math.rsqrt %16 : vector<16x1xf32>
    %18 = vector.broadcast %17 : vector<16x1xf32> to vector<16x128xf32>
    %19 = arith.mulf %9, %18 : vector<16x128xf32>
    %20 = vector.broadcast %2 : vector<1x128xf32> to vector<16x128xf32>
    %21 = arith.mulf %19, %20 : vector<16x128xf32>
    %22 = vector.broadcast %3 : vector<1x128xf32> to vector<16x128xf32>
    %23 = arith.addf %21, %22 : vector<16x128xf32>
    %c0_10 = arith.constant 0 : index
    %c0_11 = arith.constant 0 : index
    %24 = vector.load %arg5[%c0_10, %c0_11] : memref<1x256xf32, #tpu.memory_space<vmem>>, vector<1x256xf32>
    %25 = arith.truncf %23 : vector<16x128xf32> to vector<16x128xbf16>
    %c0_12 = arith.constant 0 : index
    %c0_13 = arith.constant 0 : index
    %26 = vector.load %arg4[%c0_12, %c0_13] : memref<128x256xbf16, #tpu.memory_space<vmem>>, vector<128x256xbf16>
    %cst_14 = arith.constant dense<0.000000e+00> : vector<16x256xf32>
    %27 = tpu.matmul %25, %26, %cst_14 {dimension_numbers = #tpu.dot_dimension_numbers<[1], [0], [0], [1], [0, 0, 1, 1], [], []>} : vector<16x128xbf16>, vector<128x256xbf16>, vector<16x256xf32> -> vector<16x256xf32>
    %28 = vector.broadcast %24 : vector<1x256xf32> to vector<16x256xf32>
    %29 = arith.addf %27, %28 : vector<16x256xf32>
    %30 = vector.extract_strided_slice %29 {offsets = [0, 0], sizes = [16, 128], strides = [1, 1]} : vector<16x256xf32> to vector<16x128xf32>
    %31 = vector.extract_strided_slice %29 {offsets = [0, 128], sizes = [16, 64], strides = [1, 1]} : vector<16x256xf32> to vector<16x64xf32>
    %32 = vector.extract_strided_slice %29 {offsets = [0, 192], sizes = [16, 64], strides = [1, 1]} : vector<16x256xf32> to vector<16x64xf32>
    %c0_15 = arith.constant 0 : index
    %c0_16 = arith.constant 0 : index
    %33 = vector.load %arg6[%c0_15, %c0_16] : memref<16x128xf32, #tpu.memory_space<vmem>>, vector<16x128xf32>
    %34 = arith.mulf %30, %33 : vector<16x128xf32>
    %c64_i32 = arith.constant 64 : i32
    %35 = tpu.dynamic_rotate %30 by %c64_i32 dim 1 : vector<16x128xf32>, i32 -> vector<16x128xf32>
    %c0_17 = arith.constant 0 : index
    %c0_18 = arith.constant 0 : index
    %36 = vector.load %arg7[%c0_17, %c0_18] : memref<16x128xf32, #tpu.memory_space<vmem>>, vector<16x128xf32>
    %37 = arith.mulf %35, %36 : vector<16x128xf32>
    %38 = arith.addf %34, %37 : vector<16x128xf32>
    %c0_19 = arith.constant 0 : index
    %c0_20 = arith.constant 0 : index
    %39 = vector.load %arg8[%c0_19, %c0_20] : memref<16x64xf32, #tpu.memory_space<vmem>>, vector<16x64xf32>
    %40 = arith.mulf %31, %39 : vector<16x64xf32>
    %c32_i32 = arith.constant 32 : i32
    %41 = tpu.dynamic_rotate %31 by %c32_i32 dim 1 : vector<16x64xf32>, i32 -> vector<16x64xf32>
    %c0_21 = arith.constant 0 : index
    %c0_22 = arith.constant 0 : index
    %42 = vector.load %arg9[%c0_21, %c0_22] : memref<16x64xf32, #tpu.memory_space<vmem>>, vector<16x64xf32>
    %43 = arith.mulf %41, %42 : vector<16x64xf32>
    %44 = arith.addf %40, %43 : vector<16x64xf32>
    %45 = arith.truncf %38 : vector<16x128xf32> to vector<16x128xbf16>
    %46 = arith.truncf %44 : vector<16x64xf32> to vector<16x64xbf16>
    %47 = arith.truncf %32 : vector<16x64xf32> to vector<16x64xbf16>
    %cst_23 = arith.constant 0.000000e+00 : bf16
    %48 = vector.broadcast %cst_23 : bf16 to vector<64x128xbf16>
    %c0_24 = arith.constant 0 : index
    %c0_25 = arith.constant 0 : index
    %49 = vector.load %arg20[%c0_24, %c0_25] : memref<64x128xbf16, #tpu.memory_space<vmem>>, vector<64x128xbf16>
    tpu.vector_store %arg20[%c0_24, %c0_25], %48 {strides = array<i32>} : memref<64x128xbf16, #tpu.memory_space<vmem>>, vector<64x128xbf16>,
    %cst_26 = arith.constant 0.000000e+00 : bf16
    %50 = vector.broadcast %cst_26 : bf16 to vector<64x256xbf16>
    %c0_27 = arith.constant 0 : index
    %c0_28 = arith.constant 0 : index
    %51 = vector.load %arg21[%c0_27, %c0_28] : memref<64x256xbf16, #tpu.memory_space<vmem>>, vector<64x256xbf16>
    tpu.vector_store %arg21[%c0_27, %c0_28], %50 {strides = array<i32>} : memref<64x256xbf16, #tpu.memory_space<vmem>>, vector<64x256xbf16>,
    %cst_29 = arith.constant 1.000000e+00 : bf16
    %52 = vector.broadcast %cst_29 : bf16 to vector<16x32xbf16>
    %53 = vector.extract_strided_slice %46 {offsets = [0, 0], sizes = [16, 16], strides = [1, 1]} : vector<16x64xbf16> to vector<16x16xbf16>
    %c0_30 = arith.constant 0 : index
    %c0_31 = arith.constant 0 : index
    %54 = vector.load %arg20[%c0_30, %c0_31] : memref<64x128xbf16, #tpu.memory_space<vmem>>, vector<16x16xbf16>
    tpu.vector_store %arg20[%c0_30, %c0_31], %53 {strides = array<i32>} : memref<64x128xbf16, #tpu.memory_space<vmem>>, vector<16x16xbf16>,
    %55 = vector.extract_strided_slice %46 {offsets = [0, 32], sizes = [16, 16], strides = [1, 1]} : vector<16x64xbf16> to vector<16x16xbf16>
    %c0_32 = arith.constant 0 : index
    %c64 = arith.constant 64 : index
    %56 = vector.load %arg20[%c0_32, %c64] : memref<64x128xbf16, #tpu.memory_space<vmem>>, vector<16x16xbf16>
    tpu.vector_store %arg20[%c0_32, %c64], %55 {strides = array<i32>} : memref<64x128xbf16, #tpu.memory_space<vmem>>, vector<16x16xbf16>,
    %57 = vector.extract_strided_slice %47 {offsets = [0, 0], sizes = [16, 32], strides = [1, 1]} : vector<16x64xbf16> to vector<16x32xbf16>
    %c0_33 = arith.constant 0 : index
    %c0_34 = arith.constant 0 : index
    %58 = vector.load %arg21[%c0_33, %c0_34] : memref<64x256xbf16, #tpu.memory_space<vmem>>, vector<16x32xbf16>
    tpu.vector_store %arg21[%c0_33, %c0_34], %57 {strides = array<i32>} : memref<64x256xbf16, #tpu.memory_space<vmem>>, vector<16x32xbf16>,
    %c0_35 = arith.constant 0 : index
    %c128 = arith.constant 128 : index
    %59 = vector.load %arg21[%c0_35, %c128] : memref<64x256xbf16, #tpu.memory_space<vmem>>, vector<16x32xbf16>
    tpu.vector_store %arg21[%c0_35, %c128], %52 {strides = array<i32>} : memref<64x256xbf16, #tpu.memory_space<vmem>>, vector<16x32xbf16>,
    %60 = vector.extract_strided_slice %46 {offsets = [0, 0], sizes = [16, 16], strides = [1, 1]} : vector<16x64xbf16> to vector<16x16xbf16>
    %c16 = arith.constant 16 : index
    %c16_36 = arith.constant 16 : index
    %61 = vector.load %arg20[%c16, %c16_36] : memref<64x128xbf16, #tpu.memory_space<vmem>>, vector<16x16xbf16>
    tpu.vector_store %arg20[%c16, %c16_36], %60 {strides = array<i32>} : memref<64x128xbf16, #tpu.memory_space<vmem>>, vector<16x16xbf16>,
    %62 = vector.extract_strided_slice %46 {offsets = [0, 32], sizes = [16, 16], strides = [1, 1]} : vector<16x64xbf16> to vector<16x16xbf16>
    %c16_37 = arith.constant 16 : index
    %c80 = arith.constant 80 : index
    %63 = vector.load %arg20[%c16_37, %c80] : memref<64x128xbf16, #tpu.memory_space<vmem>>, vector<16x16xbf16>
    tpu.vector_store %arg20[%c16_37, %c80], %62 {strides = array<i32>} : memref<64x128xbf16, #tpu.memory_space<vmem>>, vector<16x16xbf16>,
    %64 = vector.extract_strided_slice %47 {offsets = [0, 0], sizes = [16, 32], strides = [1, 1]} : vector<16x64xbf16> to vector<16x32xbf16>
    %c16_38 = arith.constant 16 : index
    %c32 = arith.constant 32 : index
    %65 = vector.load %arg21[%c16_38, %c32] : memref<64x256xbf16, #tpu.memory_space<vmem>>, vector<16x32xbf16>
    tpu.vector_store %arg21[%c16_38, %c32], %64 {strides = array<i32>} : memref<64x256xbf16, #tpu.memory_space<vmem>>, vector<16x32xbf16>,
    %c16_39 = arith.constant 16 : index
    %c160 = arith.constant 160 : index
    %66 = vector.load %arg21[%c16_39, %c160] : memref<64x256xbf16, #tpu.memory_space<vmem>>, vector<16x32xbf16>
    tpu.vector_store %arg21[%c16_39, %c160], %52 {strides = array<i32>} : memref<64x256xbf16, #tpu.memory_space<vmem>>, vector<16x32xbf16>,
    %67 = vector.extract_strided_slice %46 {offsets = [0, 16], sizes = [16, 16], strides = [1, 1]} : vector<16x64xbf16> to vector<16x16xbf16>
    %c32_40 = arith.constant 32 : index
    %c32_41 = arith.constant 32 : index
    %68 = vector.load %arg20[%c32_40, %c32_41] : memref<64x128xbf16, #tpu.memory_space<vmem>>, vector<16x16xbf16>
    tpu.vector_store %arg20[%c32_40, %c32_41], %67 {strides = array<i32>} : memref<64x128xbf16, #tpu.memory_space<vmem>>, vector<16x16xbf16>,
    %69 = vector.extract_strided_slice %46 {offsets = [0, 48], sizes = [16, 16], strides = [1, 1]} : vector<16x64xbf16> to vector<16x16xbf16>
    %c32_42 = arith.constant 32 : index
    %c96 = arith.constant 96 : index
    %70 = vector.load %arg20[%c32_42, %c96] : memref<64x128xbf16, #tpu.memory_space<vmem>>, vector<16x16xbf16>
    tpu.vector_store %arg20[%c32_42, %c96], %69 {strides = array<i32>} : memref<64x128xbf16, #tpu.memory_space<vmem>>, vector<16x16xbf16>,
    %71 = vector.extract_strided_slice %47 {offsets = [0, 32], sizes = [16, 32], strides = [1, 1]} : vector<16x64xbf16> to vector<16x32xbf16>
    %c32_43 = arith.constant 32 : index
    %c64_44 = arith.constant 64 : index
    %72 = vector.load %arg21[%c32_43, %c64_44] : memref<64x256xbf16, #tpu.memory_space<vmem>>, vector<16x32xbf16>
    tpu.vector_store %arg21[%c32_43, %c64_44], %71 {strides = array<i32>} : memref<64x256xbf16, #tpu.memory_space<vmem>>, vector<16x32xbf16>,
    %c32_45 = arith.constant 32 : index
    %c192 = arith.constant 192 : index
    %73 = vector.load %arg21[%c32_45, %c192] : memref<64x256xbf16, #tpu.memory_space<vmem>>, vector<16x32xbf16>
    tpu.vector_store %arg21[%c32_45, %c192], %52 {strides = array<i32>} : memref<64x256xbf16, #tpu.memory_space<vmem>>, vector<16x32xbf16>,
    %74 = vector.extract_strided_slice %46 {offsets = [0, 16], sizes = [16, 16], strides = [1, 1]} : vector<16x64xbf16> to vector<16x16xbf16>
    %c48 = arith.constant 48 : index
    %c48_46 = arith.constant 48 : index
    %75 = vector.load %arg20[%c48, %c48_46] : memref<64x128xbf16, #tpu.memory_space<vmem>>, vector<16x16xbf16>
    tpu.vector_store %arg20[%c48, %c48_46], %74 {strides = array<i32>} : memref<64x128xbf16, #tpu.memory_space<vmem>>, vector<16x16xbf16>,
    %76 = vector.extract_strided_slice %46 {offsets = [0, 48], sizes = [16, 16], strides = [1, 1]} : vector<16x64xbf16> to vector<16x16xbf16>
    %c48_47 = arith.constant 48 : index
    %c112 = arith.constant 112 : index
    %77 = vector.load %arg20[%c48_47, %c112] : memref<64x128xbf16, #tpu.memory_space<vmem>>, vector<16x16xbf16>
    tpu.vector_store %arg20[%c48_47, %c112], %76 {strides = array<i32>} : memref<64x128xbf16, #tpu.memory_space<vmem>>, vector<16x16xbf16>,
    %78 = vector.extract_strided_slice %47 {offsets = [0, 32], sizes = [16, 32], strides = [1, 1]} : vector<16x64xbf16> to vector<16x32xbf16>
    %c48_48 = arith.constant 48 : index
    %c96_49 = arith.constant 96 : index
    %79 = vector.load %arg21[%c48_48, %c96_49] : memref<64x256xbf16, #tpu.memory_space<vmem>>, vector<16x32xbf16>
    tpu.vector_store %arg21[%c48_48, %c96_49], %78 {strides = array<i32>} : memref<64x256xbf16, #tpu.memory_space<vmem>>, vector<16x32xbf16>,
    %c48_50 = arith.constant 48 : index
    %c224 = arith.constant 224 : index
    %80 = vector.load %arg21[%c48_50, %c224] : memref<64x256xbf16, #tpu.memory_space<vmem>>, vector<16x32xbf16>
    tpu.vector_store %arg21[%c48_50, %c224], %52 {strides = array<i32>} : memref<64x256xbf16, #tpu.memory_space<vmem>>, vector<16x32xbf16>,
    %c0_51 = arith.constant 0 : index
    %c0_52 = arith.constant 0 : index
    %81 = vector.load %arg20[%c0_51, %c0_52] : memref<64x128xbf16, #tpu.memory_space<vmem>>, vector<64x128xbf16>
    %cst_53 = arith.constant dense<0.000000e+00> : vector<16x64xf32>
    %82 = tpu.matmul %45, %81, %cst_53 {dimension_numbers = #tpu.dot_dimension_numbers<[1], [1], [0], [0], [0, 0, 1, 0], [], []>} : vector<16x128xbf16>, vector<64x128xbf16>, vector<16x64xf32> -> vector<16x64xf32>
    %cst_54 = arith.constant 3.125000e-02 : f32
    %83 = vector.broadcast %cst_54 : f32 to vector<16x64xf32>
    %84 = arith.mulf %82, %83 : vector<16x64xf32>
    %c0_55 = arith.constant 0 : index
    %c0_56 = arith.constant 0 : index
    %85 = vector.load %arg10[%c0_55, %c0_56] : memref<16x64xf32, #tpu.memory_space<vmem>>, vector<16x64xf32>
    %86 = arith.addf %84, %85 : vector<16x64xf32>
    %cst_57 = arith.constant dense<0xFF800000> : vector<16xf32>
    %87 = vector.multi_reduction <maximumf>, %86, %cst_57 [1] : vector<16x64xf32> to vector<16xf32>
    %88 = vector.shape_cast %87 : vector<16xf32> to vector<16x1xf32>
    %89 = vector.broadcast %88 : vector<16x1xf32> to vector<16x64xf32>
    %90 = arith.subf %86, %89 : vector<16x64xf32>
    %91 = math.exp %90 : vector<16x64xf32>
    %92 = arith.truncf %91 : vector<16x64xf32> to vector<16x64xbf16>
    %c0_58 = arith.constant 0 : index
    %c0_59 = arith.constant 0 : index
    %93 = vector.load %arg21[%c0_58, %c0_59] : memref<64x256xbf16, #tpu.memory_space<vmem>>, vector<64x256xbf16>
    %cst_60 = arith.constant dense<0.000000e+00> : vector<16x256xf32>
    %94 = tpu.matmul %92, %93, %cst_60 {dimension_numbers = #tpu.dot_dimension_numbers<[1], [0], [0], [1], [0, 0, 1, 1], [], []>} : vector<16x64xbf16>, vector<64x256xbf16>, vector<16x256xf32> -> vector<16x256xf32>
    %95 = vector.extract_strided_slice %94 {offsets = [0, 0], sizes = [16, 128], strides = [1, 1]} : vector<16x256xf32> to vector<16x128xf32>
    %96 = vector.extract_strided_slice %94 {offsets = [0, 128], sizes = [16, 128], strides = [1, 1]} : vector<16x256xf32> to vector<16x128xf32>
    %97 = tpu.reciprocal %96 {approx = true} : vector<16x128xf32> -> vector<16x128xf32>
    %98 = arith.mulf %95, %97 : vector<16x128xf32>
    %c0_61 = arith.constant 0 : index
    %c0_62 = arith.constant 0 : index
    %99 = vector.load %arg12[%c0_61, %c0_62] : memref<1x128xf32, #tpu.memory_space<vmem>>, vector<1x128xf32>
    %100 = arith.truncf %98 : vector<16x128xf32> to vector<16x128xbf16>
    %c0_63 = arith.constant 0 : index
    %c0_64 = arith.constant 0 : index
    %101 = vector.load %arg11[%c0_63, %c0_64] : memref<128x128xbf16, #tpu.memory_space<vmem>>, vector<128x128xbf16>
    %cst_65 = arith.constant dense<0.000000e+00> : vector<16x128xf32>
    %102 = tpu.matmul %100, %101, %cst_65 {dimension_numbers = #tpu.dot_dimension_numbers<[1], [0], [0], [1], [0, 0, 1, 1], [], []>} : vector<16x128xbf16>, vector<128x128xbf16>, vector<16x128xf32> -> vector<16x128xf32>
    %103 = vector.broadcast %99 : vector<1x128xf32> to vector<16x128xf32>
    %104 = arith.addf %102, %103 : vector<16x128xf32>
    %105 = arith.addf %1, %104 : vector<16x128xf32>
    %c0_66 = arith.constant 0 : index
    %c0_67 = arith.constant 0 : index
    %106 = vector.load %arg13[%c0_66, %c0_67] : memref<1x128xf32, #tpu.memory_space<vmem>>, vector<1x128xf32>
    %c0_68 = arith.constant 0 : index
    %c0_69 = arith.constant 0 : index
    %107 = vector.load %arg14[%c0_68, %c0_69] : memref<1x128xf32, #tpu.memory_space<vmem>>, vector<1x128xf32>
    %cst_70 = arith.constant dense<0.000000e+00> : vector<16xf32>
    %108 = vector.multi_reduction <add>, %105, %cst_70 [1] : vector<16x128xf32> to vector<16xf32>
    %109 = vector.shape_cast %108 : vector<16xf32> to vector<16x1xf32>
    %cst_71 = arith.constant 1.280000e+02 : f32
    %110 = vector.broadcast %cst_71 : f32 to vector<16x1xf32>
    %111 = arith.divf %109, %110 : vector<16x1xf32>
    %112 = vector.broadcast %111 : vector<16x1xf32> to vector<16x128xf32>
    %113 = arith.subf %105, %112 : vector<16x128xf32>
    %114 = arith.mulf %113, %113 : vector<16x128xf32>
    %cst_72 = arith.constant dense<0.000000e+00> : vector<16xf32>
    %115 = vector.multi_reduction <add>, %114, %cst_72 [1] : vector<16x128xf32> to vector<16xf32>
    %116 = vector.shape_cast %115 : vector<16xf32> to vector<16x1xf32>
    %cst_73 = arith.constant 1.280000e+02 : f32
    %117 = vector.broadcast %cst_73 : f32 to vector<16x1xf32>
    %118 = arith.divf %116, %117 : vector<16x1xf32>
    %cst_74 = arith.constant 9.99999974E-6 : f32
    %119 = vector.broadcast %cst_74 : f32 to vector<16x1xf32>
    %120 = arith.addf %118, %119 : vector<16x1xf32>
    %121 = math.rsqrt %120 : vector<16x1xf32>
    %122 = vector.broadcast %121 : vector<16x1xf32> to vector<16x128xf32>
    %123 = arith.mulf %113, %122 : vector<16x128xf32>
    %124 = vector.broadcast %106 : vector<1x128xf32> to vector<16x128xf32>
    %125 = arith.mulf %123, %124 : vector<16x128xf32>
    %126 = vector.broadcast %107 : vector<1x128xf32> to vector<16x128xf32>
    %127 = arith.addf %125, %126 : vector<16x128xf32>
    %c0_75 = arith.constant 0 : index
    %c0_76 = arith.constant 0 : index
    %128 = vector.load %arg16[%c0_75, %c0_76] : memref<1x512xf32, #tpu.memory_space<vmem>>, vector<1x512xf32>
    %129 = arith.truncf %127 : vector<16x128xf32> to vector<16x128xbf16>
    %c0_77 = arith.constant 0 : index
    %c0_78 = arith.constant 0 : index
    %130 = vector.load %arg15[%c0_77, %c0_78] : memref<128x512xbf16, #tpu.memory_space<vmem>>, vector<128x512xbf16>
    %cst_79 = arith.constant dense<0.000000e+00> : vector<16x512xf32>
    %131 = tpu.matmul %129, %130, %cst_79 {dimension_numbers = #tpu.dot_dimension_numbers<[1], [0], [0], [1], [0, 0, 1, 1], [], []>} : vector<16x128xbf16>, vector<128x512xbf16>, vector<16x512xf32> -> vector<16x512xf32>
    %132 = vector.broadcast %128 : vector<1x512xf32> to vector<16x512xf32>
    %133 = arith.addf %131, %132 : vector<16x512xf32>
    %134 = vector.extract_strided_slice %133 {offsets = [0, 0], sizes = [16, 256], strides = [1, 1]} : vector<16x512xf32> to vector<16x256xf32>
    %135 = vector.extract_strided_slice %133 {offsets = [0, 256], sizes = [16, 256], strides = [1, 1]} : vector<16x512xf32> to vector<16x256xf32>
    %cst_80 = arith.constant -1.702000e+00 : f32
    %136 = vector.broadcast %cst_80 : f32 to vector<16x256xf32>
    %137 = arith.mulf %136, %134 : vector<16x256xf32>
    %138 = math.exp %137 : vector<16x256xf32>
    %cst_81 = arith.constant 1.000000e+00 : f32
    %139 = vector.broadcast %cst_81 : f32 to vector<16x256xf32>
    %140 = arith.addf %139, %138 : vector<16x256xf32>
    %141 = tpu.reciprocal %140 {approx = true} : vector<16x256xf32> -> vector<16x256xf32>
    %142 = arith.mulf %134, %141 : vector<16x256xf32>
    %cst_82 = arith.constant 1.000000e+00 : f32
    %143 = vector.broadcast %cst_82 : f32 to vector<16x256xf32>
    %144 = arith.addf %135, %143 : vector<16x256xf32>
    %145 = arith.mulf %142, %144 : vector<16x256xf32>
    %c0_83 = arith.constant 0 : index
    %c0_84 = arith.constant 0 : index
    %146 = vector.load %arg18[%c0_83, %c0_84] : memref<1x128xf32, #tpu.memory_space<vmem>>, vector<1x128xf32>
    %147 = arith.truncf %145 : vector<16x256xf32> to vector<16x256xbf16>
    %c0_85 = arith.constant 0 : index
    %c0_86 = arith.constant 0 : index
    %148 = vector.load %arg17[%c0_85, %c0_86] : memref<256x128xbf16, #tpu.memory_space<vmem>>, vector<256x128xbf16>
    %cst_87 = arith.constant dense<0.000000e+00> : vector<16x128xf32>
    %149 = tpu.matmul %147, %148, %cst_87 {dimension_numbers = #tpu.dot_dimension_numbers<[1], [0], [0], [1], [0, 0, 1, 1], [], []>} : vector<16x256xbf16>, vector<256x128xbf16>, vector<16x128xf32> -> vector<16x128xf32>
    %150 = vector.broadcast %146 : vector<1x128xf32> to vector<16x128xf32>
    %151 = arith.addf %149, %150 : vector<16x128xf32>
    %152 = arith.addf %105, %151 : vector<16x128xf32>
    %c0_88 = arith.constant 0 : index
    %c0_89 = arith.constant 0 : index
    %c0_90 = arith.constant 0 : index
    %153 = vector.load %arg19[%c0_88, %c0_89, %c0_90] : memref<1x16x128xf32, #tpu.memory_space<vmem>>, vector<1x16x128xf32>
    %154 = vector.shape_cast %153 : vector<1x16x128xf32> to vector<16x128xf32>
    %155 = vector.shape_cast %152 : vector<16x128xf32> to vector<1x16x128xf32>
    tpu.vector_store %arg19[%c0_88, %c0_89, %c0_90], %155 {strides = array<i32>} : memref<1x16x128xf32, #tpu.memory_space<vmem>>, vector<1x16x128xf32>,
    return
  }
  func.func @transform_0(%arg0: i32) -> (i32, i32, i32) {
    %c0_i32 = arith.constant 0 : i32
    %c0_i32_0 = arith.constant 0 : i32
    %c0_i32_1 = arith.constant 0 : i32
    return %arg0, %c0_i32, %c0_i32_0 : i32, i32, i32
  }
  func.func @transform_1(%arg0: i32) -> (i32, i32) {
    %c0_i32 = arith.constant 0 : i32
    %c0_i32_0 = arith.constant 0 : i32
    %c0_i32_1 = arith.constant 0 : i32
    return %c0_i32, %c0_i32_0 : i32, i32
  }
  func.func @transform_2(%arg0: i32) -> (i32, i32) {
    %c0_i32 = arith.constant 0 : i32
    %c0_i32_0 = arith.constant 0 : i32
    %c0_i32_1 = arith.constant 0 : i32
    return %c0_i32, %c0_i32_0 : i32, i32
  }
  func.func @transform_3(%arg0: i32) -> (i32, i32) {
    %c0_i32 = arith.constant 0 : i32
    %c0_i32_0 = arith.constant 0 : i32
    %c0_i32_1 = arith.constant 0 : i32
    return %c0_i32, %c0_i32_0 : i32, i32
  }
  func.func @transform_4(%arg0: i32) -> (i32, i32) {
    %c0_i32 = arith.constant 0 : i32
    %c0_i32_0 = arith.constant 0 : i32
    %c0_i32_1 = arith.constant 0 : i32
    return %c0_i32, %c0_i32_0 : i32, i32
  }
  func.func @transform_5(%arg0: i32) -> (i32, i32) {
    %c0_i32 = arith.constant 0 : i32
    %c0_i32_0 = arith.constant 0 : i32
    %c0_i32_1 = arith.constant 0 : i32
    return %c0_i32, %c0_i32_0 : i32, i32
  }
  func.func @transform_6(%arg0: i32) -> (i32, i32) {
    %c0_i32 = arith.constant 0 : i32
    %c0_i32_0 = arith.constant 0 : i32
    %c0_i32_1 = arith.constant 0 : i32
    return %c0_i32, %c0_i32_0 : i32, i32
  }
  func.func @transform_7(%arg0: i32) -> (i32, i32) {
    %c0_i32 = arith.constant 0 : i32
    %c0_i32_0 = arith.constant 0 : i32
    %c0_i32_1 = arith.constant 0 : i32
    return %c0_i32, %c0_i32_0 : i32, i32
  }
  func.func @transform_8(%arg0: i32) -> (i32, i32) {
    %c0_i32 = arith.constant 0 : i32
    %c0_i32_0 = arith.constant 0 : i32
    %c0_i32_1 = arith.constant 0 : i32
    return %c0_i32, %c0_i32_0 : i32, i32
  }
  func.func @transform_9(%arg0: i32) -> (i32, i32) {
    %c0_i32 = arith.constant 0 : i32
    %c0_i32_0 = arith.constant 0 : i32
    %c0_i32_1 = arith.constant 0 : i32
    return %c0_i32, %c0_i32_0 : i32, i32
  }
  func.func @transform_10(%arg0: i32) -> (i32, i32) {
    %c0_i32 = arith.constant 0 : i32
    %c0_i32_0 = arith.constant 0 : i32
    %c0_i32_1 = arith.constant 0 : i32
    return %c0_i32, %c0_i32_0 : i32, i32
  }
  func.func @transform_11(%arg0: i32) -> (i32, i32) {
    %c0_i32 = arith.constant 0 : i32
    %c0_i32_0 = arith.constant 0 : i32
    %c0_i32_1 = arith.constant 0 : i32
    return %c0_i32, %c0_i32_0 : i32, i32
  }
  func.func @transform_12(%arg0: i32) -> (i32, i32) {
    %c0_i32 = arith.constant 0 : i32
    %c0_i32_0 = arith.constant 0 : i32
    %c0_i32_1 = arith.constant 0 : i32
    return %c0_i32, %c0_i32_0 : i32, i32
  }
  func.func @transform_13(%arg0: i32) -> (i32, i32) {
    %c0_i32 = arith.constant 0 : i32
    %c0_i32_0 = arith.constant 0 : i32
    %c0_i32_1 = arith.constant 0 : i32
    return %c0_i32, %c0_i32_0 : i32, i32
  }
  func.func @transform_14(%arg0: i32) -> (i32, i32) {
    %c0_i32 = arith.constant 0 : i32
    %c0_i32_0 = arith.constant 0 : i32
    %c0_i32_1 = arith.constant 0 : i32
    return %c0_i32, %c0_i32_0 : i32, i32
  }
  func.func @transform_15(%arg0: i32) -> (i32, i32) {
    %c0_i32 = arith.constant 0 : i32
    %c0_i32_0 = arith.constant 0 : i32
    %c0_i32_1 = arith.constant 0 : i32
    return %c0_i32, %c0_i32_0 : i32, i32
  }
  func.func @transform_16(%arg0: i32) -> (i32, i32) {
    %c0_i32 = arith.constant 0 : i32
    %c0_i32_0 = arith.constant 0 : i32
    %c0_i32_1 = arith.constant 0 : i32
    return %c0_i32, %c0_i32_0 : i32, i32
  }
  func.func @transform_17(%arg0: i32) -> (i32, i32) {
    %c0_i32 = arith.constant 0 : i32
    %c0_i32_0 = arith.constant 0 : i32
    %c0_i32_1 = arith.constant 0 : i32
    return %c0_i32, %c0_i32_0 : i32, i32
  }
  func.func @transform_18(%arg0: i32) -> (i32, i32, i32) {
    %c0_i32 = arith.constant 0 : i32
    %c0_i32_0 = arith.constant 0 : i32
    %c0_i32_1 = arith.constant 0 : i32
    return %arg0, %c0_i32, %c0_i32_0 : i32, i32, i32
  }
}

</mosaic_0001>

<llo_original>
// kernel: tile.44
$region0: #{tile.44}
  %s0 = inlined_call_operand.vmem [shape: f32[16,4,16], index: 0, kind: input, shape index: {}]
  %s1 = inlined_call_operand.vmem [shape: f32[16,64], index: 1, kind: output, shape index: {}]
  $region1: #{tile.44} parent=0
    #allocation0 [shape = 'u8[65536]{0}', space=vmem, size = 0x10000, scoped, tag = 'scoped mem for input reshape']
    %s3 = sshllo.u32 0, 4
    %s4 = smul.addr 4, 15
    %s5 = scalar_lea.vmem %s0, %s4
    %v6 = vld [vmem:[%s5] sm:%s3]
    %s7 = scalar_lea.vmem [#allocation0], 120
    %8 = vst [vmem:[%s7] sm:%s3] %v6
    %s9 = smul.addr 4, 14
    %s10 = scalar_lea.vmem %s0, %s9
    %v11 = vld [vmem:[%s10] sm:%s3]
    %s12 = scalar_lea.vmem [#allocation0], 112
    %13 = vst [vmem:[%s12] sm:%s3] %v11
    %s14 = smul.addr 4, 13
    %s15 = scalar_lea.vmem %s0, %s14
    %v16 = vld [vmem:[%s15] sm:%s3]
    %s17 = scalar_lea.vmem [#allocation0], 104
    %18 = vst [vmem:[%s17] sm:%s3] %v16
    %s19 = smul.addr 4, 12
    %s20 = scalar_lea.vmem %s0, %s19
    %v21 = vld [vmem:[%s20] sm:%s3]
    %s22 = scalar_lea.vmem [#allocation0], 96
    %23 = vst [vmem:[%s22] sm:%s3] %v21
    %s24 = smul.addr 4, 11
    %s25 = scalar_lea.vmem %s0, %s24
    %v26 = vld [vmem:[%s25] sm:%s3]
    %s27 = scalar_lea.vmem [#allocation0], 88
    %28 = vst [vmem:[%s27] sm:%s3] %v26
    %s29 = smul.addr 4, 10
    %s30 = scalar_lea.vmem %s0, %s29
    %v31 = vld [vmem:[%s30] sm:%s3]
    %s32 = scalar_lea.vmem [#allocation0], 80
    %33 = vst [vmem:[%s32] sm:%s3] %v31
    %s34 = smul.addr 4, 9
    %s35 = scalar_lea.vmem %s0, %s34
    %v36 = vld [vmem:[%s35] sm:%s3]
    %s37 = scalar_lea.vmem [#allocation0], 72
    %38 = vst [vmem:[%s37] sm:%s3] %v36
    %s39 = smul.addr 4, 8
    %s40 = scalar_lea.vmem %s0, %s39
    %v41 = vld [vmem:[%s40] sm:%s3]
    %s42 = scalar_lea.vmem [#allocation0], 64
    %43 = vst [vmem:[%s42] sm:%s3] %v41
    %s44 = smul.addr 4, 7
    %s45 = scalar_lea.vmem %s0, %s44
    %v46 = vld [vmem:[%s45] sm:%s3]
    %s47 = scalar_lea.vmem [#allocation0], 56
    %48 = vst [vmem:[%s47] sm:%s3] %v46
    %s49 = smul.addr 4, 6
    %s50 = scalar_lea.vmem %s0, %s49
    %v51 = vld [vmem:[%s50] sm:%s3]
    %s52 = scalar_lea.vmem [#allocation0], 48
    %53 = vst [vmem:[%s52] sm:%s3] %v51
    %s54 = smul.addr 4, 5
    %s55 = scalar_lea.vmem %s0, %s54
    %v56 = vld [vmem:[%s55] sm:%s3]
    %s57 = scalar_lea.vmem [#allocation0], 40
    %58 = vst [vmem:[%s57] sm:%s3] %v56
    %s59 = smul.addr 4, 4
    %s60 = scalar_lea.vmem %s0, %s59
    %v61 = vld [vmem:[%s60] sm:%s3]
    %s62 = scalar_lea.vmem [#allocation0], 32
    %63 = vst [vmem:[%s62] sm:%s3] %v61
    %s64 = smul.addr 4, 3
    %s65 = scalar_lea.vmem %s0, %s64
    %v66 = vld [vmem:[%s65] sm:%s3]
    %s67 = scalar_lea.vmem [#allocation0], 24
    %68 = vst [vmem:[%s67] sm:%s3] %v66
    %s69 = smul.addr 4, 2
    %s70 = scalar_lea.vmem %s0, %s69
    %v71 = vld [vmem:[%s70] sm:%s3]
    %s72 = scalar_lea.vmem [#allocation0], 16
    %73 = vst [vmem:[%s72] sm:%s3] %v71
    %s74 = scalar_lea.vmem %s0, 4
    %v75 = vld [vmem:[%s74] sm:%s3]
    %s76 = scalar_lea.vmem [#allocation0], 8
    %77 = vst [vmem:[%s76] sm:%s3] %v75
    %v78 = vld [vmem:[%s0] sm:%s3]
    %79 = vst [vmem:[#allocation0] sm:%s3] %v78
    %v80 = vld [vmem:[#allocation0] ss:$8 sm:$0xf]
    %v81 = vld [vmem:[#allocation0] ss:$8 sm:$0xf0]
    %vm82 = vcmask 1047556
    %v83 = vsel %vm82, %v81, %v80
    %vm84 = vcmask 130048
    %85 = vst.msk [vmem:[%s1] sm:$0xff] %vm84, %v83
    %s86 = scalar_lea.vmem [#allocation0], 64
    %v87 = vld [vmem:[%s86] ss:$8 sm:$0xf]
    %s88 = scalar_lea.vmem [#allocation0], 64
    %v89 = vld [vmem:[%s88] ss:$8 sm:$0xf0]
    %vm90 = vcmask 1047556
    %v91 = vsel %vm90, %v89, %v87
    %vm92 = vcmask 130048
    %s93 = scalar_lea.vmem %s1, 8
    %94 = vst.msk [vmem:[%s93] sm:$0xff] %vm92, %v91
    %s95 = scalar_lea.vmem [#allocation0], 3
    %v96 = vld [vmem:[%s95] ss:$8 sm:$0xf]
    %s97 = scalar_lea.vmem [#allocation0], 3
    %v98 = vld [vmem:[%s97] ss:$8 sm:$0xf0]
    %vm99 = vcmask 1047556
    %v100 = vsel %vm99, %v98, %v96
    %101 = vrot.lane.b32.xlu0 %v100, 48
    %v102 = vpop.permute.xlu0 %101
    %vm103 = vcmask 523648
    %104 = vst.msk [vmem:[%s1] sm:$0xff] %vm103, %v102
    %s105 = scalar_lea.vmem [#allocation0], 67
    %v106 = vld [vmem:[%s105] ss:$8 sm:$0xf]
    %s107 = scalar_lea.vmem [#allocation0], 67
    %v108 = vld [vmem:[%s107] ss:$8 sm:$0xf0]
    %vm109 = vcmask 1047556
    %v110 = vsel %vm109, %v108, %v106
    %111 = vrot.lane.b32.xlu0 %v110, 48
    %v112 = vpop.permute.xlu0 %111
    %vm113 = vcmask 523648
    %s114 = scalar_lea.vmem %s1, 8
    %115 = vst.msk [vmem:[%s114] sm:$0xff] %vm113, %v112
    %s116 = scalar_lea.vmem [#allocation0], 2
    %v117 = vld [vmem:[%s116] ss:$8 sm:$0xf]
    %s118 = scalar_lea.vmem [#allocation0], 2
    %v119 = vld [vmem:[%s118] ss:$8 sm:$0xf0]
    %vm120 = vcmask 1047556
    %v121 = vsel %vm120, %v119, %v117
    %122 = vrot.lane.b32.xlu0 %v121, 32
    %v123 = vpop.permute.xlu0 %122
    %vm124 = vcmask 392448
    %125 = vst.msk [vmem:[%s1] sm:$0xff] %vm124, %v123
    %s126 = scalar_lea.vmem [#allocation0], 66
    %v127 = vld [vmem:[%s126] ss:$8 sm:$0xf]
    %s128 = scalar_lea.vmem [#allocation0], 66
    %v129 = vld [vmem:[%s128] ss:$8 sm:$0xf0]
    %vm130 = vcmask 1047556
    %v131 = vsel %vm130, %v129, %v127
    %132 = vrot.lane.b32.xlu0 %v131, 32
    %v133 = vpop.permute.xlu0 %132
    %vm134 = vcmask 392448
    %s135 = scalar_lea.vmem %s1, 8
    %136 = vst.msk [vmem:[%s135] sm:$0xff] %vm134, %v133
    %s137 = scalar_lea.vmem [#allocation0], 1
    %v138 = vld [vmem:[%s137] ss:$8 sm:$0xf]
    %s139 = scalar_lea.vmem [#allocation0], 1
    %v140 = vld [vmem:[%s139] ss:$8 sm:$0xf0]
    %vm141 = vcmask 1047556
    %v142 = vsel %vm141, %v140, %v138
    %143 = vrot.lane.b32.xlu0 %v142, 16
    %v144 = vpop.permute.xlu0 %143
    %vm145 = vcmask 261248
    %146 = vst.msk [vmem:[%s1] sm:$0xff] %vm145, %v144
    %s147 = scalar_lea.vmem [#allocation0], 65
    %v148 = vld [vmem:[%s147] ss:$8 sm:$0xf]
    %s149 = scalar_lea.vmem [#allocation0], 65
    %v150 = vld [vmem:[%s149] ss:$8 sm:$0xf0]
    %vm151 = vcmask 1047556
    %v152 = vsel %vm151, %v150, %v148
    %153 = vrot.lane.b32.xlu0 %v152, 16
    %v154 = vpop.permute.xlu0 %153
    %vm155 = vcmask 261248
    %s156 = scalar_lea.vmem %s1, 8
    %157 = vst.msk [vmem:[%s156] sm:$0xff] %vm155, %v154

// kernel: tile.39
$region0: #{tile.39}
  %s0 = inlined_call_operand.vmem [shape: f32[16,8,16], index: 0, kind: input, shape index: {}]
  %s1 = inlined_call_operand.vmem [shape: f32[16,128], index: 1, kind: output, shape index: {}]
  %v2 = vld [vmem:[%s0] ss:$8 sm:$0xf]
  %v3 = vld [vmem:[%s0] ss:$8 sm:$0xf0]
  %vm4 = vcmask 1047556
  %v5 = vsel %vm4, %v3, %v2
  %vm6 = vcmask 130048
  %7 = vst.msk [vmem:[%s1] sm:$0xff] %vm6, %v5
  %s8 = scalar_lea.vmem %s0, 64
  %v9 = vld [vmem:[%s8] ss:$8 sm:$0xf]
  %s10 = scalar_lea.vmem %s0, 64
  %v11 = vld [vmem:[%s10] ss:$8 sm:$0xf0]
  %vm12 = vcmask 1047556
  %v13 = vsel %vm12, %v11, %v9
  %vm14 = vcmask 130048
  %s15 = scalar_lea.vmem %s1, 8
  %16 = vst.msk [vmem:[%s15] sm:$0xff] %vm14, %v13
  %s17 = scalar_lea.vmem %s0, 7
  %v18 = vld [vmem:[%s17] ss:$8 sm:$0xf]
  %s19 = scalar_lea.vmem %s0, 7
  %v20 = vld [vmem:[%s19] ss:$8 sm:$0xf0]
  %vm21 = vcmask 1047556
  %v22 = vsel %vm21, %v20, %v18
  %23 = vrot.lane.b32.xlu0 %v22, 112
  %v24 = vpop.permute.xlu0 %23
  %vm25 = vcmask 1048448
  %26 = vst.msk [vmem:[%s1] sm:$0xff] %vm25, %v24
  %s27 = scalar_lea.vmem %s0, 71
  %v28 = vld [vmem:[%s27] ss:$8 sm:$0xf]
  %s29 = scalar_lea.vmem %s0, 71
  %v30 = vld [vmem:[%s29] ss:$8 sm:$0xf0]
  %vm31 = vcmask 1047556
  %v32 = vsel %vm31, %v30, %v28
  %33 = vrot.lane.b32.xlu0 %v32, 112
  %v34 = vpop.permute.xlu0 %33
  %vm35 = vcmask 1048448
  %s36 = scalar_lea.vmem %s1, 8
  %37 = vst.msk [vmem:[%s36] sm:$0xff] %vm35, %v34
  %s38 = scalar_lea.vmem %s0, 6
  %v39 = vld [vmem:[%s38] ss:$8 sm:$0xf]
  %s40 = scalar_lea.vmem %s0, 6
  %v41 = vld [vmem:[%s40] ss:$8 sm:$0xf0]
  %vm42 = vcmask 1047556
  %v43 = vsel %vm42, %v41, %v39
  %44 = vrot.lane.b32.xlu0 %v43, 96
  %v45 = vpop.permute.xlu0 %44
  %vm46 = vcmask 917248
  %47 = vst.msk [vmem:[%s1] sm:$0xff] %vm46, %v45
  %s48 = scalar_lea.vmem %s0, 70
  %v49 = vld [vmem:[%s48] ss:$8 sm:$0xf]
  %s50 = scalar_lea.vmem %s0, 70
  %v51 = vld [vmem:[%s50] ss:$8 sm:$0xf0]
  %vm52 = vcmask 1047556
  %v53 = vsel %vm52, %v51, %v49
  %54 = vrot.lane.b32.xlu0 %v53, 96
  %v55 = vpop.permute.xlu0 %54
  %vm56 = vcmask 917248
  %s57 = scalar_lea.vmem %s1, 8
  %58 = vst.msk [vmem:[%s57] sm:$0xff] %vm56, %v55
  %s59 = scalar_lea.vmem %s0, 5
  %v60 = vld [vmem:[%s59] ss:$8 sm:$0xf]
  %s61 = scalar_lea.vmem %s0, 5
  %v62 = vld [vmem:[%s61] ss:$8 sm:$0xf0]
  %vm63 = vcmask 1047556
  %v64 = vsel %vm63, %v62, %v60
  %65 = vrot.lane.b32.xlu0 %v64, 80
  %v66 = vpop.permute.xlu0 %65
  %vm67 = vcmask 786048
  %68 = vst.msk [vmem:[%s1] sm:$0xff] %vm67, %v66
  %s69 = scalar_lea.vmem %s0, 69
  %v70 = vld [vmem:[%s69] ss:$8 sm:$0xf]
  %s71 = scalar_lea.vmem %s0, 69
  %v72 = vld [vmem:[%s71] ss:$8 sm:$0xf0]
  %vm73 = vcmask 1047556
  %v74 = vsel %vm73, %v72, %v70
  %75 = vrot.lane.b32.xlu0 %v74, 80
  %v76 = vpop.permute.xlu0 %75
  %vm77 = vcmask 786048
  %s78 = scalar_lea.vmem %s1, 8
  %79 = vst.msk [vmem:[%s78] sm:$0xff] %vm77, %v76
  %s80 = scalar_lea.vmem %s0, 4
  %v81 = vld [vmem:[%s80] ss:$8 sm:$0xf]
  %s82 = scalar_lea.vmem %s0, 4
  %v83 = vld [vmem:[%s82] ss:$8 sm:$0xf0]
  %vm84 = vcmask 1047556
  %v85 = vsel %vm84, %v83, %v81
  %86 = vrot.lane.b32.xlu0 %v85, 64
  %v87 = vpop.permute.xlu0 %86
  %vm88 = vcmask 654848
  %89 = vst.msk [vmem:[%s1] sm:$0xff] %vm88, %v87
  %s90 = scalar_lea.vmem %s0, 68
  %v91 = vld [vmem:[%s90] ss:$8 sm:$0xf]
  %s92 = scalar_lea.vmem %s0, 68
  %v93 = vld [vmem:[%s92] ss:$8 sm:$0xf0]
  %vm94 = vcmask 1047556
  %v95 = vsel %vm94, %v93, %v91
  %96 = vrot.lane.b32.xlu0 %v95, 64
  %v97 = vpop.permute.xlu0 %96
  %vm98 = vcmask 654848
  %s99 = scalar_lea.vmem %s1, 8
  %100 = vst.msk [vmem:[%s99] sm:$0xff] %vm98, %v97
  %s101 = scalar_lea.vmem %s0, 3
  %v102 = vld [vmem:[%s101] ss:$8 sm:$0xf]
  %s103 = scalar_lea.vmem %s0, 3
  %v104 = vld [vmem:[%s103] ss:$8 sm:$0xf0]
  %vm105 = vcmask 1047556
  %v106 = vsel %vm105, %v104, %v102
  %107 = vrot.lane.b32.xlu0 %v106, 48
  %v108 = vpop.permute.xlu0 %107
  %vm109 = vcmask 523648
  %110 = vst.msk [vmem:[%s1] sm:$0xff] %vm109, %v108
  %s111 = scalar_lea.vmem %s0, 67
  %v112 = vld [vmem:[%s111] ss:$8 sm:$0xf]
  %s113 = scalar_lea.vmem %s0, 67
  %v114 = vld [vmem:[%s113] ss:$8 sm:$0xf0]
  %vm115 = vcmask 1047556
  %v116 = vsel %vm115, %v114, %v112
  %117 = vrot.lane.b32.xlu0 %v116, 48
  %v118 = vpop.permute.xlu0 %117
  %vm119 = vcmask 523648
  %s120 = scalar_lea.vmem %s1, 8
  %121 = vst.msk [vmem:[%s120] sm:$0xff] %vm119, %v118
  %s122 = scalar_lea.vmem %s0, 2
  %v123 = vld [vmem:[%s122] ss:$8 sm:$0xf]
  %s124 = scalar_lea.vmem %s0, 2
  %v125 = vld [vmem:[%s124] ss:$8 sm:$0xf0]
  %vm126 = vcmask 1047556
  %v127 = vsel %vm126, %v125, %v123
  %128 = vrot.lane.b32.xlu0 %v127, 32
  %v129 = vpop.permute.xlu0 %128
  %vm130 = vcmask 392448
  %131 = vst.msk [vmem:[%s1] sm:$0xff] %vm130, %v129
  %s132 = scalar_lea.vmem %s0, 66
  %v133 = vld [vmem:[%s132] ss:$8 sm:$0xf]
  %s134 = scalar_lea.vmem %s0, 66
  %v135 = vld [vmem:[%s134] ss:$8 sm:$0xf0]
  %vm136 = vcmask 1047556
  %v137 = vsel %vm136, %v135, %v133
  %138 = vrot.lane.b32.xlu0 %v137, 32
  %v139 = vpop.permute.xlu0 %138
  %vm140 = vcmask 392448
  %s141 = scalar_lea.vmem %s1, 8
  %142 = vst.msk [vmem:[%s141] sm:$0xff] %vm140, %v139
  %s143 = scalar_lea.vmem %s0, 1
  %v144 = vld [vmem:[%s143] ss:$8 sm:$0xf]
  %s145 = scalar_lea.vmem %s0, 1
  %v146 = vld [vmem:[%s145] ss:$8 sm:$0xf0]
  %vm147 = vcmask 1047556
  %v148 = vsel %vm147, %v146, %v144
  %149 = vrot.lane.b32.xlu0 %v148, 16
  %v150 = vpop.permute.xlu0 %149
  %vm151 = vcmask 261248
  %152 = vst.msk [vmem:[%s1] sm:$0xff] %vm151, %v150
  %s153 = scalar_lea.vmem %s0, 65
  %v154 = vld [vmem:[%s153] ss:$8 sm:$0xf]
  %s155 = scalar_lea.vmem %s0, 65
  %v156 = vld [vmem:[%s155] ss:$8 sm:$0xf0]
  %vm157 = vcmask 1047556
  %v158 = vsel %vm157, %v156, %v154
  %159 = vrot.lane.b32.xlu0 %v158, 16
  %v160 = vpop.permute.xlu0 %159
  %vm161 = vcmask 261248
  %s162 = scalar_lea.vmem %s1, 8
  %163 = vst.msk [vmem:[%s162] sm:$0xff] %vm161, %v160

// kernel: neg.2
$region0: #{neg.2}
  #allocation0 [shape = 's32[1]{0}', space=sflag, size = 0x4, scoped, tag = 'scoped memory for neg.2']
  %s0 = inlined_call_operand.vmem [shape: f32[16,64], index: 0, kind: input, shape index: {}]
  %s1 = inlined_call_operand.vmem [shape: f32[16,64], index: 1, kind: output, shape index: {}]
  %v2 = vld [vmem:[%s0] sm:$0xff]
  %3 = xla_tuple %v2
  %4 = xla_tuple %3
  %v5 = vxor.u32 %v2, 2147483648
  %6 = xla_tuple %v5
  %7 = vst [vmem:[%s1] sm:$0xff] %v5
  %s8 = scalar_lea.vmem %s0, 8
  %v9 = vld [vmem:[%s8] sm:$0xff]
  %10 = xla_tuple %v9
  %11 = xla_tuple %10
  %v12 = vxor.u32 %v9, 2147483648
  %13 = xla_tuple %v12
  %s14 = scalar_lea.vmem %s1, 8
  %15 = vst [vmem:[%s14] sm:$0xff] %v12

// kernel: tile.59
$region0: #{tile.59}
  %s0 = inlined_call_operand.vmem [shape: f32[16,2,16], index: 0, kind: input, shape index: {}]
  %s1 = inlined_call_operand.vmem [shape: f32[16,32], index: 1, kind: output, shape index: {}]
  $region1: #{tile.59} parent=0
    #allocation0 [shape = 'u8[65536]{0}', space=vmem, size = 0x10000, scoped, tag = 'scoped mem for input reshape']
    %s3 = sshllo.u32 0, 2
    %s4 = smul.addr 2, 15
    %s5 = scalar_lea.vmem %s0, %s4
    %v6 = vld [vmem:[%s5] sm:%s3]
    %s7 = scalar_lea.vmem [#allocation0], 120
    %8 = vst [vmem:[%s7] sm:%s3] %v6
    %s9 = smul.addr 2, 14
    %s10 = scalar_lea.vmem %s0, %s9
    %v11 = vld [vmem:[%s10] sm:%s3]
    %s12 = scalar_lea.vmem [#allocation0], 112
    %13 = vst [vmem:[%s12] sm:%s3] %v11
    %s14 = smul.addr 2, 13
    %s15 = scalar_lea.vmem %s0, %s14
    %v16 = vld [vmem:[%s15] sm:%s3]
    %s17 = scalar_lea.vmem [#allocation0], 104
    %18 = vst [vmem:[%s17] sm:%s3] %v16
    %s19 = smul.addr 2, 12
    %s20 = scalar_lea.vmem %s0, %s19
    %v21 = vld [vmem:[%s20] sm:%s3]
    %s22 = scalar_lea.vmem [#allocation0], 96
    %23 = vst [vmem:[%s22] sm:%s3] %v21
    %s24 = smul.addr 2, 11
    %s25 = scalar_lea.vmem %s0, %s24
    %v26 = vld [vmem:[%s25] sm:%s3]
    %s27 = scalar_lea.vmem [#allocation0], 88
    %28 = vst [vmem:[%s27] sm:%s3] %v26
    %s29 = smul.addr 2, 10
    %s30 = scalar_lea.vmem %s0, %s29
    %v31 = vld [vmem:[%s30] sm:%s3]
    %s32 = scalar_lea.vmem [#allocation0], 80
    %33 = vst [vmem:[%s32] sm:%s3] %v31
    %s34 = smul.addr 2, 9
    %s35 = scalar_lea.vmem %s0, %s34
    %v36 = vld [vmem:[%s35] sm:%s3]
    %s37 = scalar_lea.vmem [#allocation0], 72
    %38 = vst [vmem:[%s37] sm:%s3] %v36
    %s39 = smul.addr 2, 8
    %s40 = scalar_lea.vmem %s0, %s39
    %v41 = vld [vmem:[%s40] sm:%s3]
    %s42 = scalar_lea.vmem [#allocation0], 64
    %43 = vst [vmem:[%s42] sm:%s3] %v41
    %s44 = smul.addr 2, 7
    %s45 = scalar_lea.vmem %s0, %s44
    %v46 = vld [vmem:[%s45] sm:%s3]
    %s47 = scalar_lea.vmem [#allocation0], 56
    %48 = vst [vmem:[%s47] sm:%s3] %v46
    %s49 = smul.addr 2, 6
    %s50 = scalar_lea.vmem %s0, %s49
    %v51 = vld [vmem:[%s50] sm:%s3]
    %s52 = scalar_lea.vmem [#allocation0], 48
    %53 = vst [vmem:[%s52] sm:%s3] %v51
    %s54 = smul.addr 2, 5
    %s55 = scalar_lea.vmem %s0, %s54
    %v56 = vld [vmem:[%s55] sm:%s3]
    %s57 = scalar_lea.vmem [#allocation0], 40
    %58 = vst [vmem:[%s57] sm:%s3] %v56
    %s59 = smul.addr 2, 4
    %s60 = scalar_lea.vmem %s0, %s59
    %v61 = vld [vmem:[%s60] sm:%s3]
    %s62 = scalar_lea.vmem [#allocation0], 32
    %63 = vst [vmem:[%s62] sm:%s3] %v61
    %s64 = smul.addr 2, 3
    %s65 = scalar_lea.vmem %s0, %s64
    %v66 = vld [vmem:[%s65] sm:%s3]
    %s67 = scalar_lea.vmem [#allocation0], 24
    %68 = vst [vmem:[%s67] sm:%s3] %v66
    %s69 = smul.addr 2, 2
    %s70 = scalar_lea.vmem %s0, %s69
    %v71 = vld [vmem:[%s70] sm:%s3]
    %s72 = scalar_lea.vmem [#allocation0], 16
    %73 = vst [vmem:[%s72] sm:%s3] %v71
    %s74 = scalar_lea.vmem %s0, 2
    %v75 = vld [vmem:[%s74] sm:%s3]
    %s76 = scalar_lea.vmem [#allocation0], 8
    %77 = vst [vmem:[%s76] sm:%s3] %v75
    %v78 = vld [vmem:[%s0] sm:%s3]
    %79 = vst [vmem:[#allocation0] sm:%s3] %v78
    %v80 = vld [vmem:[#allocation0] ss:$8 sm:$0xf]
    %v81 = vld [vmem:[#allocation0] ss:$8 sm:$0xf0]
    %vm82 = vcmask 1047556
    %v83 = vsel %vm82, %v81, %v80
    %vm84 = vcmask 130048
    %85 = vst.msk [vmem:[%s1] sm:$0xff] %vm84, %v83
    %s86 = scalar_lea.vmem [#allocation0], 64
    %v87 = vld [vmem:[%s86] ss:$8 sm:$0xf]
    %s88 = scalar_lea.vmem [#allocation0], 64
    %v89 = vld [vmem:[%s88] ss:$8 sm:$0xf0]
    %vm90 = vcmask 1047556
    %v91 = vsel %vm90, %v89, %v87
    %vm92 = vcmask 130048
    %s93 = scalar_lea.vmem %s1, 8
    %94 = vst.msk [vmem:[%s93] sm:$0xff] %vm92, %v91
    %s95 = scalar_lea.vmem [#allocation0], 1
    %v96 = vld [vmem:[%s95] ss:$8 sm:$0xf]
    %s97 = scalar_lea.vmem [#allocation0], 1
    %v98 = vld [vmem:[%s97] ss:$8 sm:$0xf0]
    %vm99 = vcmask 1047556
    %v100 = vsel %vm99, %v98, %v96
    %101 = vrot.lane.b32.xlu0 %v100, 16
    %v102 = vpop.permute.xlu0 %101
    %vm103 = vcmask 261248
    %104 = vst.msk [vmem:[%s1] sm:$0xff] %vm103, %v102
    %s105 = scalar_lea.vmem [#allocation0], 65
    %v106 = vld [vmem:[%s105] ss:$8 sm:$0xf]
    %s107 = scalar_lea.vmem [#allocation0], 65
    %v108 = vld [vmem:[%s107] ss:$8 sm:$0xf0]
    %vm109 = vcmask 1047556
    %v110 = vsel %vm109, %v108, %v106
    %111 = vrot.lane.b32.xlu0 %v110, 16
    %v112 = vpop.permute.xlu0 %111
    %vm113 = vcmask 261248
    %s114 = scalar_lea.vmem %s1, 8
    %115 = vst.msk [vmem:[%s114] sm:$0xff] %vm113, %v112

// kernel: neg.3
$region0: #{neg.3}
  #allocation0 [shape = 's32[1]{0}', space=sflag, size = 0x4, scoped, tag = 'scoped memory for neg.3']
  %s0 = inlined_call_operand.vmem [shape: f32[16,32], index: 0, kind: input, shape index: {}]
  %s1 = inlined_call_operand.vmem [shape: f32[16,32], index: 1, kind: output, shape index: {}]
  %v2 = vld [vmem:[%s0] sm:$0xff]
  %3 = xla_tuple %v2
  %4 = xla_tuple %3
  %v5 = vxor.u32 %v2, 2147483648
  %6 = xla_tuple %v5
  %7 = vst [vmem:[%s1] sm:$0xff] %v5
  %s8 = scalar_lea.vmem %s0, 8
  %v9 = vld [vmem:[%s8] sm:$0xff]
  %10 = xla_tuple %v9
  %11 = xla_tuple %10
  %v12 = vxor.u32 %v9, 2147483648
  %13 = xla_tuple %v12
  %s14 = scalar_lea.vmem %s1, 8
  %15 = vst [vmem:[%s14] sm:$0xff] %v12

// kernel: decoder_layer.1
$region0: #{decoder_layer.1}
  #allocation0 [shape = 'u32[]', space=smem, size = 0x4, offset = 0x4, fixed_abs, tag = 'smem constant byte address 0x4 - core index']
  #allocation1 [shape = 'u32[144,128]{1,0:T(1,128)}', space=vmem, size = 0x12000, scoped, tag = 'internal scratch']
  #allocation2 [shape = 'bf16[64,128]{1,0:T(16,128)(2,1)}', space=vmem, size = 0x4000, scoped, tag = 'scratch operand']
  #allocation3 [shape = 'bf16[64,256]{1,0:T(16,128)(2,1)}', space=vmem, size = 0x8000, scoped, tag = 'scratch operand']
  %s0 = inlined_call_operand.vmem [shape: f32[2,16,128], index: 0, kind: input, shape index: {}]
  %s1 = inlined_call_operand.vmem [shape: f32[1,128], index: 1, kind: input, shape index: {}]
  %s2 = inlined_call_operand.vmem [shape: f32[1,128], index: 2, kind: input, shape index: {}]
  %s3 = inlined_call_operand.vmem [shape: bf16[128,256], index: 3, kind: input, shape index: {}]
  %s4 = inlined_call_operand.vmem [shape: f32[1,256], index: 4, kind: input, shape index: {}]
  %s5 = inlined_call_operand.vmem [shape: f32[16,128], index: 5, kind: input, shape index: {}]
  %s6 = inlined_call_operand.vmem [shape: f32[16,128], index: 6, kind: input, shape index: {}]
  %s7 = inlined_call_operand.vmem [shape: f32[16,64], index: 7, kind: input, shape index: {}]
  %s8 = inlined_call_operand.vmem [shape: f32[16,64], index: 8, kind: input, shape index: {}]
  %s9 = inlined_call_operand.vmem [shape: f32[16,64], index: 9, kind: input, shape index: {}]
  %s10 = inlined_call_operand.vmem [shape: bf16[128,128], index: 10, kind: input, shape index: {}]
  %s11 = inlined_call_operand.vmem [shape: f32[1,128], index: 11, kind: input, shape index: {}]
  %s12 = inlined_call_operand.vmem [shape: f32[1,128], index: 12, kind: input, shape index: {}]
  %s13 = inlined_call_operand.vmem [shape: f32[1,128], index: 13, kind: input, shape index: {}]
  %s14 = inlined_call_operand.vmem [shape: bf16[128,512], index: 14, kind: input, shape index: {}]
  %s15 = inlined_call_operand.vmem [shape: f32[1,512], index: 15, kind: input, shape index: {}]
  %s16 = inlined_call_operand.vmem [shape: bf16[256,128], index: 16, kind: input, shape index: {}]
  %s17 = inlined_call_operand.vmem [shape: f32[1,128], index: 17, kind: input, shape index: {}]
  %s18 = inlined_call_operand.hbm [shape: f32[2,16,128], index: 18, kind: output, shape index: {}]
  %s19 = sld [smem:[#allocation0]]
  $region105: #{decoder_layer.1} parent=0
    _
  %s21 = ssub.s32 1, %s19
  %s22 = scalar_select 0, %s21, %s19
  $region1: #{decoder_layer.1} parent=0
    #allocation4 [shape = 'u8[16384]{0}', space=vmem, size = 0x4000, scoped, tag = 'output window, operand 0']
    #allocation5 [shape = 's32[2]{0}', space=sflag, size = 0x8, scoped, tag = 'scoped memory for decoder_layer.1']
    %23 = vsyncpa [#allocation5], 0
    %s24 = scalar_lea.sflag [#allocation5], 1
    %25 = vsyncpa %s24, 0
    loop: start=0, step=1, limit=4
    $region2: #{decoder_layer.1} parent=1 // loop_pre_header
      _
    $region3: #{decoder_layer.1} parent=1 // loop_header
      %s27 = sphi 0, %s31
      %p28 = scmp.ge.s32.totalorder %s27, 4
      %s37 = sphi 0, %s39
      %s40 = sphi 0, %s37
      %s41 = sphi 0, %s40
      %s57 = sphi 0, %s41
      %s61 = sphi 0, %s61
      %s63 = sphi 0, %s61
      %s64 = sphi 0, %s63
      %s78 = sphi 0, %s64
      %s82 = sphi 0, %s82
      %s84 = sphi 0, %s82
      %s85 = sphi 0, %s84
      %s99 = sphi 0, %s85
      %s103 = sphi 0, %s103
      %s105 = sphi 0, %s103
      %s106 = sphi 0, %s105
      %s120 = sphi 0, %s106
      %s124 = sphi 0, %s124
      %s126 = sphi 0, %s124
      %s127 = sphi 0, %s126
      %s141 = sphi 0, %s127
      %s145 = sphi 0, %s145
      %s147 = sphi 0, %s145
      %s148 = sphi 0, %s147
      %s162 = sphi 0, %s148
      %s166 = sphi 0, %s166
      %s168 = sphi 0, %s166
      %s169 = sphi 0, %s168
      %s183 = sphi 0, %s169
      %s187 = sphi 0, %s187
      %s189 = sphi 0, %s187
      %s190 = sphi 0, %s189
      %s204 = sphi 0, %s190
      %s208 = sphi 0, %s208
      %s210 = sphi 0, %s208
      %s211 = sphi 0, %s210
      %s225 = sphi 0, %s211
      %s229 = sphi 0, %s229
      %s231 = sphi 0, %s229
      %s232 = sphi 0, %s231
      %s246 = sphi 0, %s232
      %s250 = sphi 0, %s250
      %s252 = sphi 0, %s250
      %s253 = sphi 0, %s252
      %s267 = sphi 0, %s253
      %s271 = sphi 0, %s271
      %s273 = sphi 0, %s271
      %s274 = sphi 0, %s273
      %s288 = sphi 0, %s274
      %s292 = sphi 0, %s292
      %s294 = sphi 0, %s292
      %s295 = sphi 0, %s294
      %s309 = sphi 0, %s295
      %s313 = sphi 0, %s313
      %s315 = sphi 0, %s313
      %s316 = sphi 0, %s315
      %s330 = sphi 0, %s316
      %s334 = sphi 0, %s334
      %s336 = sphi 0, %s334
      %s337 = sphi 0, %s336
      %s351 = sphi 0, %s337
      %s355 = sphi 0, %s355
      %s357 = sphi 0, %s355
      %s358 = sphi 0, %s357
      %s372 = sphi 0, %s358
      %s376 = sphi 0, %s376
      %s378 = sphi 0, %s376
      %s379 = sphi 0, %s378
      %s393 = sphi 0, %s379
      %s397 = sphi 0, %s397
      %s399 = sphi 0, %s397
      %s400 = sphi 0, %s399
      %s414 = sphi 0, %s400
      %s420 = sphi 0, %s422
      %s423 = sphi 0, %s420
      %s424 = sphi 0, %s423
      %s440 = sphi 0, %s424
    $region4: #{decoder_layer.1} parent=1 // loop_header_branch
      %30 = sbr.rel (%p28) target = $region8
    $region5: #{decoder_layer.1} parent=1 // loop_body
      %s32 = ssub.s32 %s27, 1
      %s33 = ssub.s32 %s27, 2
      %s34 = sadd.s32 %s27, 1
      %s35 = ssub.s32 %s27, %s34
      %p36 = scmp.eq.s32.totalorder %s35, 0
      %s38 = sadd.s32 %s37, 1
      %s39 = scalar_select %p36, %s37, %s38
      %p42 = pneg %p36
      %p43 = scmp.eq.s32.totalorder %s27, 1
      %p44 = por %p42, %p43
      %p45 = scmp.ne.s32.totalorder %s37, %s40
      %p46 = scmp.eq.s32.totalorder %s27, 0
      %p47 = por %p45, %p46
      %p48 = scmp.ne.s32.totalorder %s37, %s40
      %p49 = scmp.eq.s32.totalorder %s32, 1
      %p50 = por %p48, %p49
      %p51 = scmp.ne.s32.totalorder %s40, %s41
      %p52 = scmp.eq.s32.totalorder %s32, 0
      %p53 = por %p51, %p52
      %p54 = scmp.ne.s32.totalorder %s40, %s41
      %p55 = scmp.eq.s32.totalorder %s33, 1
      %p56 = por %p54, %p55
      %p58 = scmp.ne.s32.totalorder %s41, %s57
      %p59 = scmp.eq.s32.totalorder %s33, 0
      %p60 = por %p58, %p59
      %s62 = sadd.s32 %s61, 1
      %p65 = scmp.eq.s32.totalorder %s27, 1
      %p66 = scmp.ne.s32.totalorder %s61, %s63
      %p67 = scmp.eq.s32.totalorder %s27, 0
      %p68 = por %p66, %p67
      %p69 = scmp.ne.s32.totalorder %s61, %s63
      %p70 = scmp.eq.s32.totalorder %s32, 1
      %p71 = por %p69, %p70
      %p72 = scmp.ne.s32.totalorder %s63, %s64
      %p73 = scmp.eq.s32.totalorder %s32, 0
      %p74 = por %p72, %p73
      %p75 = scmp.ne.s32.totalorder %s63, %s64
      %p76 = scmp.eq.s32.totalorder %s33, 1
      %p77 = por %p75, %p76
      %p79 = scmp.ne.s32.totalorder %s64, %s78
      %p80 = scmp.eq.s32.totalorder %s33, 0
      %p81 = por %p79, %p80
      %s83 = sadd.s32 %s82, 1
      %p86 = scmp.eq.s32.totalorder %s27, 1
      %p87 = scmp.ne.s32.totalorder %s82, %s84
      %p88 = scmp.eq.s32.totalorder %s27, 0
      %p89 = por %p87, %p88
      %p90 = scmp.ne.s32.totalorder %s82, %s84
      %p91 = scmp.eq.s32.totalorder %s32, 1
      %p92 = por %p90, %p91
      %p93 = scmp.ne.s32.totalorder %s84, %s85
      %p94 = scmp.eq.s32.totalorder %s32, 0
      %p95 = por %p93, %p94
      %p96 = scmp.ne.s32.totalorder %s84, %s85
      %p97 = scmp.eq.s32.totalorder %s33, 1
      %p98 = por %p96, %p97
      %p100 = scmp.ne.s32.totalorder %s85, %s99
      %p101 = scmp.eq.s32.totalorder %s33, 0
      %p102 = por %p100, %p101
      %s104 = sadd.s32 %s103, 1
      %p107 = scmp.eq.s32.totalorder %s27, 1
      %p108 = scmp.ne.s32.totalorder %s103, %s105
      %p109 = scmp.eq.s32.totalorder %s27, 0
      %p110 = por %p108, %p109
      %p111 = scmp.ne.s32.totalorder %s103, %s105
      %p112 = scmp.eq.s32.totalorder %s32, 1
      %p113 = por %p111, %p112
      %p114 = scmp.ne.s32.totalorder %s105, %s106
      %p115 = scmp.eq.s32.totalorder %s32, 0
      %p116 = por %p114, %p115
      %p117 = scmp.ne.s32.totalorder %s105, %s106
      %p118 = scmp.eq.s32.totalorder %s33, 1
      %p119 = por %p117, %p118
      %p121 = scmp.ne.s32.totalorder %s106, %s120
      %p122 = scmp.eq.s32.totalorder %s33, 0
      %p123 = por %p121, %p122
      %s125 = sadd.s32 %s124, 1
      %p128 = scmp.eq.s32.totalorder %s27, 1
      %p129 = scmp.ne.s32.totalorder %s124, %s126
      %p130 = scmp.eq.s32.totalorder %s27, 0
      %p131 = por %p129, %p130
      %p132 = scmp.ne.s32.totalorder %s124, %s126
      %p133 = scmp.eq.s32.totalorder %s32, 1
      %p134 = por %p132, %p133
      %p135 = scmp.ne.s32.totalorder %s126, %s127
      %p136 = scmp.eq.s32.totalorder %s32, 0
      %p137 = por %p135, %p136
      %p138 = scmp.ne.s32.totalorder %s126, %s127
      %p139 = scmp.eq.s32.totalorder %s33, 1
      %p140 = por %p138, %p139
      %p142 = scmp.ne.s32.totalorder %s127, %s141
      %p143 = scmp.eq.s32.totalorder %s33, 0
      %p144 = por %p142, %p143
      %s146 = sadd.s32 %s145, 1
      %p149 = scmp.eq.s32.totalorder %s27, 1
      %p150 = scmp.ne.s32.totalorder %s145, %s147
      %p151 = scmp.eq.s32.totalorder %s27, 0
      %p152 = por %p150, %p151
      %p153 = scmp.ne.s32.totalorder %s145, %s147
      %p154 = scmp.eq.s32.totalorder %s32, 1
      %p155 = por %p153, %p154
      %p156 = scmp.ne.s32.totalorder %s147, %s148
      %p157 = scmp.eq.s32.totalorder %s32, 0
      %p158 = por %p156, %p157
      %p159 = scmp.ne.s32.totalorder %s147, %s148
      %p160 = scmp.eq.s32.totalorder %s33, 1
      %p161 = por %p159, %p160
      %p163 = scmp.ne.s32.totalorder %s148, %s162
      %p164 = scmp.eq.s32.totalorder %s33, 0
      %p165 = por %p163, %p164
      %s167 = sadd.s32 %s166, 1
      %p170 = scmp.eq.s32.totalorder %s27, 1
      %p171 = scmp.ne.s32.totalorder %s166, %s168
      %p172 = scmp.eq.s32.totalorder %s27, 0
      %p173 = por %p171, %p172
      %p174 = scmp.ne.s32.totalorder %s166, %s168
      %p175 = scmp.eq.s32.totalorder %s32, 1
      %p176 = por %p174, %p175
      %p177 = scmp.ne.s32.totalorder %s168, %s169
      %p178 = scmp.eq.s32.totalorder %s32, 0
      %p179 = por %p177, %p178
      %p180 = scmp.ne.s32.totalorder %s168, %s169
      %p181 = scmp.eq.s32.totalorder %s33, 1
      %p182 = por %p180, %p181
      %p184 = scmp.ne.s32.totalorder %s169, %s183
      %p185 = scmp.eq.s32.totalorder %s33, 0
      %p186 = por %p184, %p185
      %s188 = sadd.s32 %s187, 1
      %p191 = scmp.eq.s32.totalorder %s27, 1
      %p192 = scmp.ne.s32.totalorder %s187, %s189
      %p193 = scmp.eq.s32.totalorder %s27, 0
      %p194 = por %p192, %p193
      %p195 = scmp.ne.s32.totalorder %s187, %s189
      %p196 = scmp.eq.s32.totalorder %s32, 1
      %p197 = por %p195, %p196
      %p198 = scmp.ne.s32.totalorder %s189, %s190
      %p199 = scmp.eq.s32.totalorder %s32, 0
      %p200 = por %p198, %p199
      %p201 = scmp.ne.s32.totalorder %s189, %s190
      %p202 = scmp.eq.s32.totalorder %s33, 1
      %p203 = por %p201, %p202
      %p205 = scmp.ne.s32.totalorder %s190, %s204
      %p206 = scmp.eq.s32.totalorder %s33, 0
      %p207 = por %p205, %p206
      %s209 = sadd.s32 %s208, 1
      %p212 = scmp.eq.s32.totalorder %s27, 1
      %p213 = scmp.ne.s32.totalorder %s208, %s210
      %p214 = scmp.eq.s32.totalorder %s27, 0
      %p215 = por %p213, %p214
      %p216 = scmp.ne.s32.totalorder %s208, %s210
      %p217 = scmp.eq.s32.totalorder %s32, 1
      %p218 = por %p216, %p217
      %p219 = scmp.ne.s32.totalorder %s210, %s211
      %p220 = scmp.eq.s32.totalorder %s32, 0
      %p221 = por %p219, %p220
      %p222 = scmp.ne.s32.totalorder %s210, %s211
      %p223 = scmp.eq.s32.totalorder %s33, 1
      %p224 = por %p222, %p223
      %p226 = scmp.ne.s32.totalorder %s211, %s225
      %p227 = scmp.eq.s32.totalorder %s33, 0
      %p228 = por %p226, %p227
      %s230 = sadd.s32 %s229, 1
      %p233 = scmp.eq.s32.totalorder %s27, 1
      %p234 = scmp.ne.s32.totalorder %s229, %s231
      %p235 = scmp.eq.s32.totalorder %s27, 0
      %p236 = por %p234, %p235
      %p237 = scmp.ne.s32.totalorder %s229, %s231
      %p238 = scmp.eq.s32.totalorder %s32, 1
      %p239 = por %p237, %p238
      %p240 = scmp.ne.s32.totalorder %s231, %s232
      %p241 = scmp.eq.s32.totalorder %s32, 0
      %p242 = por %p240, %p241
      %p243 = scmp.ne.s32.totalorder %s231, %s232
      %p244 = scmp.eq.s32.totalorder %s33, 1
      %p245 = por %p243, %p244
      %p247 = scmp.ne.s32.totalorder %s232, %s246
      %p248 = scmp.eq.s32.totalorder %s33, 0
      %p249 = por %p247, %p248
      %s251 = sadd.s32 %s250, 1
      %p254 = scmp.eq.s32.totalorder %s27, 1
      %p255 = scmp.ne.s32.totalorder %s250, %s252
      %p256 = scmp.eq.s32.totalorder %s27, 0
      %p257 = por %p255, %p256
      %p258 = scmp.ne.s32.totalorder %s250, %s252
      %p259 = scmp.eq.s32.totalorder %s32, 1
      %p260 = por %p258, %p259
      %p261 = scmp.ne.s32.totalorder %s252, %s253
      %p262 = scmp.eq.s32.totalorder %s32, 0
      %p263 = por %p261, %p262
      %p264 = scmp.ne.s32.totalorder %s252, %s253
      %p265 = scmp.eq.s32.totalorder %s33, 1
      %p266 = por %p264, %p265
      %p268 = scmp.ne.s32.totalorder %s253, %s267
      %p269 = scmp.eq.s32.totalorder %s33, 0
      %p270 = por %p268, %p269
      %s272 = sadd.s32 %s271, 1
      %p275 = scmp.eq.s32.totalorder %s27, 1
      %p276 = scmp.ne.s32.totalorder %s271, %s273
      %p277 = scmp.eq.s32.totalorder %s27, 0
      %p278 = por %p276, %p277
      %p279 = scmp.ne.s32.totalorder %s271, %s273
      %p280 = scmp.eq.s32.totalorder %s32, 1
      %p281 = por %p279, %p280
      %p282 = scmp.ne.s32.totalorder %s273, %s274
      %p283 = scmp.eq.s32.totalorder %s32, 0
      %p284 = por %p282, %p283
      %p285 = scmp.ne.s32.totalorder %s273, %s274
      %p286 = scmp.eq.s32.totalorder %s33, 1
      %p287 = por %p285, %p286
      %p289 = scmp.ne.s32.totalorder %s274, %s288
      %p290 = scmp.eq.s32.totalorder %s33, 0
      %p291 = por %p289, %p290
      %s293 = sadd.s32 %s292, 1
      %p296 = scmp.eq.s32.totalorder %s27, 1
      %p297 = scmp.ne.s32.totalorder %s292, %s294
      %p298 = scmp.eq.s32.totalorder %s27, 0
      %p299 = por %p297, %p298
      %p300 = scmp.ne.s32.totalorder %s292, %s294
      %p301 = scmp.eq.s32.totalorder %s32, 1
      %p302 = por %p300, %p301
      %p303 = scmp.ne.s32.totalorder %s294, %s295
      %p304 = scmp.eq.s32.totalorder %s32, 0
      %p305 = por %p303, %p304
      %p306 = scmp.ne.s32.totalorder %s294, %s295
      %p307 = scmp.eq.s32.totalorder %s33, 1
      %p308 = por %p306, %p307
      %p310 = scmp.ne.s32.totalorder %s295, %s309
      %p311 = scmp.eq.s32.totalorder %s33, 0
      %p312 = por %p310, %p311
      %s314 = sadd.s32 %s313, 1
      %p317 = scmp.eq.s32.totalorder %s27, 1
      %p318 = scmp.ne.s32.totalorder %s313, %s315
      %p319 = scmp.eq.s32.totalorder %s27, 0
      %p320 = por %p318, %p319
      %p321 = scmp.ne.s32.totalorder %s313, %s315
      %p322 = scmp.eq.s32.totalorder %s32, 1
      %p323 = por %p321, %p322
      %p324 = scmp.ne.s32.totalorder %s315, %s316
      %p325 = scmp.eq.s32.totalorder %s32, 0
      %p326 = por %p324, %p325
      %p327 = scmp.ne.s32.totalorder %s315, %s316
      %p328 = scmp.eq.s32.totalorder %s33, 1
      %p329 = por %p327, %p328
      %p331 = scmp.ne.s32.totalorder %s316, %s330
      %p332 = scmp.eq.s32.totalorder %s33, 0
      %p333 = por %p331, %p332
      %s335 = sadd.s32 %s334, 1
      %p338 = scmp.eq.s32.totalorder %s27, 1
      %p339 = scmp.ne.s32.totalorder %s334, %s336
      %p340 = scmp.eq.s32.totalorder %s27, 0
      %p341 = por %p339, %p340
      %p342 = scmp.ne.s32.totalorder %s334, %s336
      %p343 = scmp.eq.s32.totalorder %s32, 1
      %p344 = por %p342, %p343
      %p345 = scmp.ne.s32.totalorder %s336, %s337
      %p346 = scmp.eq.s32.totalorder %s32, 0
      %p347 = por %p345, %p346
      %p348 = scmp.ne.s32.totalorder %s336, %s337
      %p349 = scmp.eq.s32.totalorder %s33, 1
      %p350 = por %p348, %p349
      %p352 = scmp.ne.s32.totalorder %s337, %s351
      %p353 = scmp.eq.s32.totalorder %s33, 0
      %p354 = por %p352, %p353
      %s356 = sadd.s32 %s355, 1
      %p359 = scmp.eq.s32.totalorder %s27, 1
      %p360 = scmp.ne.s32.totalorder %s355, %s357
      %p361 = scmp.eq.s32.totalorder %s27, 0
      %p362 = por %p360, %p361
      %p363 = scmp.ne.s32.totalorder %s355, %s357
      %p364 = scmp.eq.s32.totalorder %s32, 1
      %p365 = por %p363, %p364
      %p366 = scmp.ne.s32.totalorder %s357, %s358
      %p367 = scmp.eq.s32.totalorder %s32, 0
      %p368 = por %p366, %p367
      %p369 = scmp.ne.s32.totalorder %s357, %s358
      %p370 = scmp.eq.s32.totalorder %s33, 1
      %p371 = por %p369, %p370
      %p373 = scmp.ne.s32.totalorder %s358, %s372
      %p374 = scmp.eq.s32.totalorder %s33, 0
      %p375 = por %p373, %p374
      %s377 = sadd.s32 %s376, 1
      %p380 = scmp.eq.s32.totalorder %s27, 1
      %p381 = scmp.ne.s32.totalorder %s376, %s378
      %p382 = scmp.eq.s32.totalorder %s27, 0
      %p383 = por %p381, %p382
      %p384 = scmp.ne.s32.totalorder %s376, %s378
      %p385 = scmp.eq.s32.totalorder %s32, 1
      %p386 = por %p384, %p385
      %p387 = scmp.ne.s32.totalorder %s378, %s379
      %p388 = scmp.eq.s32.totalorder %s32, 0
      %p389 = por %p387, %p388
      %p390 = scmp.ne.s32.totalorder %s378, %s379
      %p391 = scmp.eq.s32.totalorder %s33, 1
      %p392 = por %p390, %p391
      %p394 = scmp.ne.s32.totalorder %s379, %s393
      %p395 = scmp.eq.s32.totalorder %s33, 0
      %p396 = por %p394, %p395
      %s398 = sadd.s32 %s397, 1
      %p401 = scmp.eq.s32.totalorder %s27, 1
      %p402 = scmp.ne.s32.totalorder %s397, %s399
      %p403 = scmp.eq.s32.totalorder %s27, 0
      %p404 = por %p402, %p403
      %p405 = scmp.ne.s32.totalorder %s397, %s399
      %p406 = scmp.eq.s32.totalorder %s32, 1
      %p407 = por %p405, %p406
      %p408 = scmp.ne.s32.totalorder %s399, %s400
      %p409 = scmp.eq.s32.totalorder %s32, 0
      %p410 = por %p408, %p409
      %p411 = scmp.ne.s32.totalorder %s399, %s400
      %p412 = scmp.eq.s32.totalorder %s33, 1
      %p413 = por %p411, %p412
      %p415 = scmp.ne.s32.totalorder %s400, %s414
      %p416 = scmp.eq.s32.totalorder %s33, 0
      %p417 = por %p415, %p416
      %s418 = ssub.s32 %s27, %s34
      %p419 = scmp.eq.s32.totalorder %s418, 0
      %s421 = sadd.s32 %s420, 1
      %s422 = scalar_select %p419, %s420, %s421
      %p425 = pneg %p419
      %p426 = scmp.eq.s32.totalorder %s27, 1
      %p427 = por %p425, %p426
      %p428 = scmp.ne.s32.totalorder %s420, %s423
      %p429 = scmp.eq.s32.totalorder %s27, 0
      %p430 = por %p428, %p429
      %p431 = scmp.ne.s32.totalorder %s420, %s423
      %p432 = scmp.eq.s32.totalorder %s32, 1
      %p433 = por %p431, %p432
      %p434 = scmp.ne.s32.totalorder %s423, %s424
      %p435 = scmp.eq.s32.totalorder %s32, 0
      %p436 = por %p434, %p435
      %p437 = scmp.ne.s32.totalorder %s423, %s424
      %p438 = scmp.eq.s32.totalorder %s33, 1
      %p439 = por %p437, %p438
      %p441 = scmp.ne.s32.totalorder %s424, %s440
      %p442 = scmp.eq.s32.totalorder %s33, 0
      %p443 = por %p441, %p442
      %p444 = scmp.le.s32.totalorder 1, %s27
      %p445 = scmp.lt.s32.totalorder %s27, 3
      %p446 = pnand %p444, %p445
      %p447 = pneg %p446
      // Predicated region
      $region9: #{decoder_layer.1} parent=5 // pred_check
        _
      $region10: #{decoder_layer.1} parent=5 // pred_check_branch
        %449 = sbr.rel (%p446) target = $region12
      $region11: #{decoder_layer.1} parent=5 // pred_region
        %s450 = ssub.s32 %s27, 1
        // Predicated region
        $region13: #{decoder_layer.1} parent=11 // pred_check
          %p451 = pneg %p74
        $region14: #{decoder_layer.1} parent=11 // pred_check_branch
          %453 = sbr.rel (%p451) target = $region16
        $region15: #{decoder_layer.1} parent=11 // pred_region
          _
        $region16: #{decoder_layer.1} parent=11 // pred_fallthru
          _
        // Predicated region
        $region17: #{decoder_layer.1} parent=11 // pred_check
          %p454 = pneg %p95
        $region18: #{decoder_layer.1} parent=11 // pred_check_branch
          %456 = sbr.rel (%p454) target = $region20
        $region19: #{decoder_layer.1} parent=11 // pred_region
          _
        $region20: #{decoder_layer.1} parent=11 // pred_fallthru
          _
        // Predicated region
        $region21: #{decoder_layer.1} parent=11 // pred_check
          %p457 = pneg %p116
        $region22: #{decoder_layer.1} parent=11 // pred_check_branch
          %459 = sbr.rel (%p457) target = $region24
        $region23: #{decoder_layer.1} parent=11 // pred_region
          _
        $region24: #{decoder_layer.1} parent=11 // pred_fallthru
          _
        // Predicated region
        $region25: #{decoder_layer.1} parent=11 // pred_check
          %p460 = pneg %p137
        $region26: #{decoder_layer.1} parent=11 // pred_check_branch
          %462 = sbr.rel (%p460) target = $region28
        $region27: #{decoder_layer.1} parent=11 // pred_region
          _
        $region28: #{decoder_layer.1} parent=11 // pred_fallthru
          _
        // Predicated region
        $region29: #{decoder_layer.1} parent=11 // pred_check
          %p463 = pneg %p158
        $region30: #{decoder_layer.1} parent=11 // pred_check_branch
          %465 = sbr.rel (%p463) target = $region32
        $region31: #{decoder_layer.1} parent=11 // pred_region
          _
        $region32: #{decoder_layer.1} parent=11 // pred_fallthru
          _
        // Predicated region
        $region33: #{decoder_layer.1} parent=11 // pred_check
          %p466 = pneg %p179
        $region34: #{decoder_layer.1} parent=11 // pred_check_branch
          %468 = sbr.rel (%p466) target = $region36
        $region35: #{decoder_layer.1} parent=11 // pred_region
          _
        $region36: #{decoder_layer.1} parent=11 // pred_fallthru
          _
        // Predicated region
        $region37: #{decoder_layer.1} parent=11 // pred_check
          %p469 = pneg %p200
        $region38: #{decoder_layer.1} parent=11 // pred_check_branch
          %471 = sbr.rel (%p469) target = $region40
        $region39: #{decoder_layer.1} parent=11 // pred_region
          _
        $region40: #{decoder_layer.1} parent=11 // pred_fallthru
          _
        // Predicated region
        $region41: #{decoder_layer.1} parent=11 // pred_check
          %p472 = pneg %p221
        $region42: #{decoder_layer.1} parent=11 // pred_check_branch
          %474 = sbr.rel (%p472) target = $region44
        $region43: #{decoder_layer.1} parent=11 // pred_region
          _
        $region44: #{decoder_layer.1} parent=11 // pred_fallthru
          _
        // Predicated region
        $region45: #{decoder_layer.1} parent=11 // pred_check
          %p475 = pneg %p242
        $region46: #{decoder_layer.1} parent=11 // pred_check_branch
          %477 = sbr.rel (%p475) target = $region48
        $region47: #{decoder_layer.1} parent=11 // pred_region
          _
        $region48: #{decoder_layer.1} parent=11 // pred_fallthru
          _
        // Predicated region
        $region49: #{decoder_layer.1} parent=11 // pred_check
          %p478 = pneg %p263
        $region50: #{decoder_layer.1} parent=11 // pred_check_branch
          %480 = sbr.rel (%p478) target = $region52
        $region51: #{decoder_layer.1} parent=11 // pred_region
          _
        $region52: #{decoder_layer.1} parent=11 // pred_fallthru
          _
        // Predicated region
        $region53: #{decoder_layer.1} parent=11 // pred_check
          %p481 = pneg %p284
        $region54: #{decoder_layer.1} parent=11 // pred_check_branch
          %483 = sbr.rel (%p481) target = $region56
        $region55: #{decoder_layer.1} parent=11 // pred_region
          _
        $region56: #{decoder_layer.1} parent=11 // pred_fallthru
          _
        // Predicated region
        $region57: #{decoder_layer.1} parent=11 // pred_check
          %p484 = pneg %p305
        $region58: #{decoder_layer.1} parent=11 // pred_check_branch
          %486 = sbr.rel (%p484) target = $region60
        $region59: #{decoder_layer.1} parent=11 // pred_region
          _
        $region60: #{decoder_layer.1} parent=11 // pred_fallthru
          _
        // Predicated region
        $region61: #{decoder_layer.1} parent=11 // pred_check
          %p487 = pneg %p326
        $region62: #{decoder_layer.1} parent=11 // pred_check_branch
          %489 = sbr.rel (%p487) target = $region64
        $region63: #{decoder_layer.1} parent=11 // pred_region
          _
        $region64: #{decoder_layer.1} parent=11 // pred_fallthru
          _
        // Predicated region
        $region65: #{decoder_layer.1} parent=11 // pred_check
          %p490 = pneg %p347
        $region66: #{decoder_layer.1} parent=11 // pred_check_branch
          %492 = sbr.rel (%p490) target = $region68
        $region67: #{decoder_layer.1} parent=11 // pred_region
          _
        $region68: #{decoder_layer.1} parent=11 // pred_fallthru
          _
        // Predicated region
        $region69: #{decoder_layer.1} parent=11 // pred_check
          %p493 = pneg %p368
        $region70: #{decoder_layer.1} parent=11 // pred_check_branch
          %495 = sbr.rel (%p493) target = $region72
        $region71: #{decoder_layer.1} parent=11 // pred_region
          _
        $region72: #{decoder_layer.1} parent=11 // pred_fallthru
          _
        // Predicated region
        $region73: #{decoder_layer.1} parent=11 // pred_check
          %p496 = pneg %p389
        $region74: #{decoder_layer.1} parent=11 // pred_check_branch
          %498 = sbr.rel (%p496) target = $region76
        $region75: #{decoder_layer.1} parent=11 // pred_region
          _
        $region76: #{decoder_layer.1} parent=11 // pred_fallthru
          _
        // Predicated region
        $region77: #{decoder_layer.1} parent=11 // pred_check
          %p499 = pneg %p410
        $region78: #{decoder_layer.1} parent=11 // pred_check_branch
          %501 = sbr.rel (%p499) target = $region80
        $region79: #{decoder_layer.1} parent=11 // pred_region
          _
        $region80: #{decoder_layer.1} parent=11 // pred_fallthru
          _
      $region12: #{decoder_layer.1} parent=5 // pred_fallthru
        _
      %p502 = scmp.lt.s32.totalorder %s27, 2
      // Predicated region
      $region81: #{decoder_layer.1} parent=5 // pred_check
        %p503 = pneg %p502
      $region82: #{decoder_layer.1} parent=5 // pred_check_branch
        %505 = sbr.rel (%p503) target = $region84
      $region83: #{decoder_layer.1} parent=5 // pred_region
        // Predicated region
        $region85: #{decoder_layer.1} parent=83 // pred_check
          %p506 = pneg %p47
        $region86: #{decoder_layer.1} parent=83 // pred_check_branch
          %508 = sbr.rel (%p506) target = $region88
        $region87: #{decoder_layer.1} parent=83 // pred_region
          %p509 = scmp.lt.s32.totalorder %s27, 1
          %s510 = scalar_select %p509, %s27, 1
          %s511 = smul.addr %s510, 2
          %s512 = smul.addr %s511, 8
          %s513 = scalar_lea.vmem %s0, %s512
        $region88: #{decoder_layer.1} parent=83 // pred_fallthru
          _
      $region84: #{decoder_layer.1} parent=5 // pred_fallthru
        _
      %p514 = scmp.le.s32.totalorder 1, %s27
      %p515 = scmp.lt.s32.totalorder %s27, 3
      %p516 = pnand %p514, %p515
      %p517 = pneg %p516
      // Predicated region
      $region89: #{decoder_layer.1} parent=5 // pred_check
        _
      $region90: #{decoder_layer.1} parent=5 // pred_check_branch
        %519 = sbr.rel (%p516) target = $region92
      $region91: #{decoder_layer.1} parent=5 // pred_region
        %s520 = ssub.s32 %s27, 1
        %p521 = scmp.lt.s32.totalorder %s32, 1
        %s522 = scalar_select %p521, %s32, 1
        %s523 = smul.addr %s522, 2
        %s524 = smul.addr %s523, 8
        %s525 = scalar_lea.vmem %s0, %s524
        %p526 = pneg %p53
        %p527 = pneg %p50
        %p528 = pneg %p74
        %p529 = pneg %p71
        %p530 = pneg %p95
        %p531 = pneg %p92
        %p532 = pneg %p116
        %p533 = pneg %p113
        %p534 = pneg %p137
        %p535 = pneg %p134
        %p536 = pneg %p158
        %p537 = pneg %p155
        %p538 = pneg %p179
        %p539 = pneg %p176
        %p540 = pneg %p200
        %p541 = pneg %p197
        %p542 = pneg %p221
        %p543 = pneg %p218
        %p544 = pneg %p242
        %p545 = pneg %p239
        %p546 = pneg %p263
        %p547 = pneg %p260
        %p548 = pneg %p284
        %p549 = pneg %p281
        %p550 = pneg %p305
        %p551 = pneg %p302
        %p552 = pneg %p326
        %p553 = pneg %p323
        %p554 = pneg %p347
        %p555 = pneg %p344
        %p556 = pneg %p368
        %p557 = pneg %p365
        %p558 = pneg %p389
        %p559 = pneg %p386
        %p560 = pneg %p410
        %p561 = pneg %p407
        %p562 = pneg %p436
        %p563 = pneg %p433
        %s564 = sand.u32 %s423, 1
        %s565 = scalar_lea.sflag [#allocation5], %s564
        %s566 = sand.u32 %s423, 1
        %s567 = smul.addr %s566, 16
        %s568 = scalar_lea.vmem [#allocation4], %s567
        %p569 = scmp.lt.s32.totalorder %s32, 1
        %s570 = scalar_select %p569, %s32, 1
        %s571 = smul.addr %s570, 2
        %s572 = smul.addr %s571, 8
        %s573 = scalar_lea.vmem %s0, %s572
        %v576 = vld [vmem:[%s573] sm:$0xff]
        %v577 = vld [vmem:[%s573 + $0x8] sm:$0xff]
        %v578 = vld [vmem:[%s1] sm:$0x1]
        %v579 = vld [vmem:[%s2] sm:$0x1]
        %580 = vadd.xlane.f32.xlu0 %v576
        %v581 = vpop.xlane.xlu0 %580
        %582 = vadd.xlane.f32.xlu0 %v577
        %v583 = vpop.xlane.xlu0 %582
        %v584 = vrcp.pop 128.0
        %v585 = vmul.f32 %v581, %v584
        %v586 = vmul.f32 %v583, %v584
        %v587 = vsub.f32 %v576, %v585
        %v588 = vsub.f32 %v577, %v586
        %v589 = vmul.f32 %v587, %v587
        %v590 = vmul.f32 %v588, %v588
        %591 = vadd.xlane.f32.xlu0 %v589
        %v592 = vpop.xlane.xlu0 %591
        %593 = vadd.xlane.f32.xlu0 %v590
        %v594 = vpop.xlane.xlu0 %593
        %v595 = vmul.f32 %v592, %v584
        %v596 = vmul.f32 %v594, %v584
        %v597 = vadd.f32 %v595, 1e-05
        %v598 = vadd.f32 %v596, 1e-05
        %v599 = vrsqrt.pop %v597
        %v600 = vrsqrt.pop %v598
        %v601 = vmul.f32 %v587, %v599
        %v602 = vmul.f32 %v588, %v600
        %v604 = vlaneseq
        %v605 = vshrl.u32 %v604, 7
        %v606 = vsub.s32 0, %v605
        %v607 = vrot.slane %v578, %v606
        %v609 = vmul.f32 %v601, %v607
        %v610 = vmul.f32 %v602, %v607
        %v612 = vlaneseq
        %v613 = vshrl.u32 %v612, 7
        %v614 = vsub.s32 0, %v613
        %v615 = vrot.slane %v579, %v614
        %v617 = vadd.f32 %v609, %v615
        %v618 = vadd.f32 %v610, %v615
        %v619 = vld [vmem:[%s4] sm:$0x3]
        %v620 = vpack.c.bf16 %v618, %v617
        %v621 = vld [vmem:[%s3] sm:$0xff]
        %v622 = vld [vmem:[%s3 + $0x8] sm:$0xff]
        %v623 = vld [vmem:[%s3 + $0x10] sm:$0xff]
        %v624 = vld [vmem:[%s3 + $0x18] sm:$0xff]
        %v625 = vld [vmem:[%s3 + $0x20] sm:$0xff]
        %v626 = vld [vmem:[%s3 + $0x28] sm:$0xff]
        %v627 = vld [vmem:[%s3 + $0x30] sm:$0xff]
        %v628 = vld [vmem:[%s3 + $0x38] sm:$0xff]
        %v629 = vld [vmem:[%s3 + $0x40] sm:$0xff]
        %v630 = vld [vmem:[%s3 + $0x48] sm:$0xff]
        %v631 = vld [vmem:[%s3 + $0x50] sm:$0xff]
        %v632 = vld [vmem:[%s3 + $0x58] sm:$0xff]
        %v633 = vld [vmem:[%s3 + $0x60] sm:$0xff]
        %v634 = vld [vmem:[%s3 + $0x68] sm:$0xff]
        %v635 = vld [vmem:[%s3 + $0x70] sm:$0xff]
        %v636 = vld [vmem:[%s3 + $0x78] sm:$0xff]
        %v638 = vlaneseq
        %v639 = vshrl.u32 %v638, 7
        %v640 = vsub.s32 0, %v639
        %v641 = vrot.slane %v619, %v640
        %v642 = vlaneseq
        %v643 = vshrl.u32 %v642, 7
        %v644 = vsub.s32 1, %v643
        %v645 = vrot.slane %v619, %v644
        %v664 = vunpack.c.l.b16 %v621
        %v665 = vunpack.c.h.b16 %v621
        %v666 = vunpack.c.l.b16 %v622
        %v667 = vunpack.c.h.b16 %v622
        %v668 = vunpack.c.l.b16 %v623
        %v669 = vunpack.c.h.b16 %v623
        %v670 = vunpack.c.l.b16 %v624
        %v671 = vunpack.c.h.b16 %v624
        %v672 = vunpack.c.l.b16 %v625
        %v673 = vunpack.c.h.b16 %v625
        %v674 = vunpack.c.l.b16 %v626
        %v675 = vunpack.c.h.b16 %v626
        %v676 = vunpack.c.l.b16 %v627
        %v677 = vunpack.c.h.b16 %v627
        %v678 = vunpack.c.l.b16 %v628
        %v679 = vunpack.c.h.b16 %v628
        %v680 = vunpack.c.l.b16 %v629
        %v681 = vunpack.c.h.b16 %v629
        %v682 = vunpack.c.l.b16 %v630
        %v683 = vunpack.c.h.b16 %v630
        %v684 = vunpack.c.l.b16 %v631
        %v685 = vunpack.c.h.b16 %v631
        %v686 = vunpack.c.l.b16 %v632
        %v687 = vunpack.c.h.b16 %v632
        %v688 = vunpack.c.l.b16 %v633
        %v689 = vunpack.c.h.b16 %v633
        %v690 = vunpack.c.l.b16 %v634
        %v691 = vunpack.c.h.b16 %v634
        %v692 = vunpack.c.l.b16 %v635
        %v693 = vunpack.c.h.b16 %v635
        %v694 = vunpack.c.l.b16 %v636
        %v695 = vunpack.c.h.b16 %v636
        %v696 = vpack.c.b16 %v666, %v664
        %v697 = vpack.c.b16 %v667, %v665
        %v698 = vpack.c.b16 %v670, %v668
        %v699 = vpack.c.b16 %v671, %v669
        %v700 = vpack.c.b16 %v674, %v672
        %v701 = vpack.c.b16 %v675, %v673
        %v702 = vpack.c.b16 %v678, %v676
        %v703 = vpack.c.b16 %v679, %v677
        %v704 = vpack.c.b16 %v682, %v680
        %v705 = vpack.c.b16 %v683, %v681
        %v706 = vpack.c.b16 %v686, %v684
        %v707 = vpack.c.b16 %v687, %v685
        %v708 = vpack.c.b16 %v690, %v688
        %v709 = vpack.c.b16 %v691, %v689
        %v710 = vpack.c.b16 %v694, %v692
        %v711 = vpack.c.b16 %v695, %v693
        %728 = vmatprep.subr.bf16.mxu0 %v697
        %729 = vmatpush1.bf16.msra.mxu0 %v696
        %730 = vmatprep.subr.bf16.mxu0 %v699
        %731 = vmatpush1.bf16.msra.mxu0 %v698
        %732 = vmatprep.subr.bf16.mxu0 %v701
        %733 = vmatpush1.bf16.msra.mxu0 %v700
        %734 = vmatprep.subr.bf16.mxu0 %v703
        %735 = vmatpush1.bf16.msra.mxu0 %v702
        %736 = vmatprep.subr.bf16.mxu0 %v705
        %737 = vmatpush1.bf16.msra.mxu0 %v704
        %738 = vmatprep.subr.bf16.mxu0 %v707
        %739 = vmatpush1.bf16.msra.mxu0 %v706
        %740 = vmatprep.subr.bf16.mxu0 %v709
        %741 = vmatpush1.bf16.msra.mxu0 %v708
        %742 = vmatprep.subr.bf16.mxu0 %v711
        %743 = vmatpush1.bf16.msra.mxu0 %v710
        %744 = vmatprep.subr.bf16.mxu0 0
        %745 = vmatpush1.bf16.msra.mxu0 0
        %746 = vmatprep.subr.bf16.mxu0 0
        %747 = vmatpush1.bf16.msra.mxu0 0
        %748 = vmatprep.subr.bf16.mxu0 0
        %749 = vmatpush1.bf16.msra.mxu0 0
        %750 = vmatprep.subr.bf16.mxu0 0
        %751 = vmatpush1.bf16.msra.mxu0 0
        %752 = vmatprep.subr.bf16.mxu0 0
        %753 = vmatpush1.bf16.msra.mxu0 0
        %754 = vmatprep.subr.bf16.mxu0 0
        %755 = vmatpush1.bf16.msra.mxu0 0
        %756 = vmatprep.subr.bf16.mxu0 0
        %757 = vmatpush1.bf16.msra.mxu0 0
        %758 = vmatprep.subr.bf16.mxu0 0
        %759 = vmatpush1.bf16.msra.mxu0 0
        %760 = vmatprep.mubr.bf16.mxu0 0
        %761 = vmatmul.mubr.bf16.gmra.mrb[0].mxu0 %v620
        %v762 = vpop.f32.mrb[0].mxu0
        %v763 = vadd.f32 %v641, %v762
        %v764 = vpop.f32.mrb[0].mxu0
        %v765 = vadd.f32 %v645, %v764
        %v766 = vpop.f32.mrb[0].mxu0
        %v767 = vadd.f32 %v641, %v766
        %v768 = vpop.f32.mrb[0].mxu0
        %v769 = vadd.f32 %v645, %v768
        %770 = vdwg.mxu0
        %v771 = vld [vmem:[%s5] sm:$0xff]
        %v772 = vld [vmem:[%s5 + $0x8] sm:$0xff]
        %v773 = vmul.f32 %v763, %v771
        %v774 = vmul.f32 %v767, %v772
        %775 = vrot.lane.b32.xlu0 %v763, 64
        %v776 = vpop.permute.xlu0 %775
        %777 = vrot.lane.b32.xlu0 %v767, 64
        %v778 = vpop.permute.xlu0 %777
        %v779 = vld [vmem:[%s6] sm:$0xff]
        %v780 = vld [vmem:[%s6 + $0x8] sm:$0xff]
        %v781 = vmul.f32 %v776, %v779
        %v782 = vmul.f32 %v778, %v780
        %v783 = vadd.f32 %v773, %v781
        %v784 = vadd.f32 %v774, %v782
        %v785 = vld [vmem:[%s7] sm:$0xff]
        %v786 = vld [vmem:[%s7 + $0x8] sm:$0xff]
        %v787 = vmul.f32 %v765, %v785
        %v788 = vmul.f32 %v769, %v786
        %vm789 = vcmask 1048064
        %790 = vrot.lane.b32.xlu0 %v765, 64
        %v791 = vpop.permute.xlu0 %790
        %v792 = vsel %vm789, %v791, %v765
        %793 = vrot.lane.b32.xlu0 %v769, 64
        %v794 = vpop.permute.xlu0 %793
        %v795 = vsel %vm789, %v794, %v769
        %796 = vrot.lane.b32.xlu0 %v792, 64
        %v797 = vpop.permute.xlu0 %796
        %798 = vrot.lane.b32.xlu0 %v795, 64
        %v799 = vpop.permute.xlu0 %798
        %v800 = vsel %vm789, %v797, %v765
        %v801 = vsel %vm789, %v799, %v769
        %v802 = vld [vmem:[%s8] sm:$0xff]
        %v803 = vld [vmem:[%s8 + $0x8] sm:$0xff]
        %806 = vrot.lane.b32.xlu0 %v802, 32
        %v807 = vpop.permute.xlu0 %806
        %808 = vrot.lane.b32.xlu0 %v803, 32
        %v809 = vpop.permute.xlu0 %808
        %v812 = vmul.f32 %v800, %v807
        %v813 = vmul.f32 %v801, %v809
        %816 = vrot.lane.b32.xlu0 %v812, 96
        %v817 = vpop.permute.xlu0 %816
        %818 = vrot.lane.b32.xlu0 %v813, 96
        %v819 = vpop.permute.xlu0 %818
        %v822 = vadd.f32 %v787, %v817
        %v823 = vadd.f32 %v788, %v819
        %v824 = vpack.c.bf16 %v784, %v783
        %v825 = vpack.c.bf16 %v823, %v822
        %v826 = vpack.c.bf16 %v769, %v765
        %827 = vst [vmem:[#allocation2] sm:$0xff] 0
        %828 = vst [vmem:[#allocation2 + $0x8] sm:$0xff] 0
        %829 = vst [vmem:[#allocation2 + $0x10] sm:$0xff] 0
        %830 = vst [vmem:[#allocation2 + $0x18] sm:$0xff] 0
        %831 = vst [vmem:[#allocation3] sm:$0xff] 0
        %832 = vst [vmem:[#allocation3 + $0x8] sm:$0xff] 0
        %833 = vst [vmem:[#allocation3 + $0x10] sm:$0xff] 0
        %834 = vst [vmem:[#allocation3 + $0x18] sm:$0xff] 0
        %835 = vst [vmem:[#allocation3 + $0x20] sm:$0xff] 0
        %836 = vst [vmem:[#allocation3 + $0x28] sm:$0xff] 0
        %837 = vst [vmem:[#allocation3 + $0x30] sm:$0xff] 0
        %838 = vst [vmem:[#allocation3 + $0x38] sm:$0xff] 0
        %vm839 = vcmask 130048
        %840 = vst.msk [vmem:[#allocation2] sm:$0xff] %vm839, %v825
        %842 = vrot.lane.b32.xlu0 %v825, 32
        %v843 = vpop.permute.xlu0 %842
        %vm845 = vcmask 654848
        %846 = vst.msk [vmem:[#allocation2] sm:$0xff] %vm845, %v843
        %848 = vrot.lane.b32.xlu0 %v826, 64
        %v849 = vpop.permute.xlu0 %848
        %vm851 = vcmask 261120
        %852 = vst.msk [vmem:[#allocation3] sm:$0xff] %vm851, %v849
        %853 = vst.msk [vmem:[#allocation3 + $0x8] sm:$0xff] %vm851, 1065369472
        %854 = vrot.lane.b32.xlu0 %v825, 16
        %v855 = vpop.permute.xlu0 %854
        %vm857 = vcmask 261248
        %858 = vst.msk [vmem:[#allocation2 + $0x8] sm:$0xff] %vm857, %v855
        %859 = vrot.lane.b32.xlu0 %v825, 48
        %v860 = vpop.permute.xlu0 %859
        %vm862 = vcmask 786048
        %863 = vst.msk [vmem:[#allocation2 + $0x8] sm:$0xff] %vm862, %v860
        %864 = vrot.lane.b32.xlu0 %v826, 96
        %v865 = vpop.permute.xlu0 %864
        %vm867 = vcmask 523520
        %868 = vst.msk [vmem:[#allocation3 + $0x10] sm:$0xff] %vm867, %v865
        %869 = vst.msk [vmem:[#allocation3 + $0x18] sm:$0xff] %vm867, 1065369472
        %vm870 = vcmask 392448
        %871 = vst.msk [vmem:[#allocation2 + $0x10] sm:$0xff] %vm870, %v855
        %vm872 = vcmask 917248
        %873 = vst.msk [vmem:[#allocation2 + $0x10] sm:$0xff] %vm872, %v860
        %vm874 = vcmask 785920
        %875 = vst.msk [vmem:[#allocation3 + $0x20] sm:$0xff] %vm874, %v865
        %876 = vst.msk [vmem:[#allocation3 + $0x28] sm:$0xff] %vm874, 1065369472
        %vm877 = vcmask 523648
        %878 = vst.msk [vmem:[#allocation2 + $0x18] sm:$0xff] %vm877, %v843
        %879 = vrot.lane.b32.xlu0 %v825, 64
        %v880 = vpop.permute.xlu0 %879
        %vm882 = vcmask 1048448
        %883 = vst.msk [vmem:[#allocation2 + $0x18] sm:$0xff] %vm882, %v880
        %vm884 = vcmask 1048320
        %885 = vst.msk [vmem:[#allocation3 + $0x30] sm:$0xff] %vm884, %v826
        %886 = vst.msk [vmem:[#allocation3 + $0x38] sm:$0xff] %vm884, 1065369472
        %v887 = vld [vmem:[#allocation2] sm:$0xff]
        %v888 = vld [vmem:[#allocation2 + $0x8] sm:$0xff]
        %v889 = vld [vmem:[#allocation2 + $0x10] sm:$0xff]
        %v890 = vld [vmem:[#allocation2 + $0x18] sm:$0xff]
        %891 = vmatprep.subr.bf16.mxu0 0
        %892 = vmatpush1.bf16.xpose.msra.mxu0 %v887
        %893 = vmatprep.subr.bf16.mxu0 0
        %894 = vmatpush1.bf16.xpose.msra.mxu0 %v888
        %895 = vmatprep.subr.bf16.mxu0 0
        %896 = vmatpush1.bf16.xpose.msra.mxu0 %v889
        %897 = vmatprep.subr.bf16.mxu0 0
        %898 = vmatpush1.bf16.xpose.msra.mxu0 %v890
        %899 = vmatprep.subr.bf16.mxu0 0
        %900 = vmatpush1.bf16.xpose.msra.mxu0 0
        %901 = vmatprep.subr.bf16.mxu0 0
        %902 = vmatpush1.bf16.xpose.msra.mxu0 0
        %903 = vmatprep.subr.bf16.mxu0 0
        %904 = vmatpush1.bf16.xpose.msra.mxu0 0
        %905 = vmatprep.subr.bf16.mxu0 0
        %906 = vmatpush1.bf16.xpose.msra.mxu0 0
        %907 = vmatprep.subr.bf16.mxu0 0
        %908 = vmatpush1.bf16.xpose.msra.mxu0 0
        %909 = vmatprep.subr.bf16.mxu0 0
        %910 = vmatpush1.bf16.xpose.msra.mxu0 0
        %911 = vmatprep.subr.bf16.mxu0 0
        %912 = vmatpush1.bf16.xpose.msra.mxu0 0
        %913 = vmatprep.subr.bf16.mxu0 0
        %914 = vmatpush1.bf16.xpose.msra.mxu0 0
        %915 = vmatprep.subr.bf16.mxu0 0
        %916 = vmatpush1.bf16.xpose.msra.mxu0 0
        %917 = vmatprep.subr.bf16.mxu0 0
        %918 = vmatpush1.bf16.xpose.msra.mxu0 0
        %919 = vmatprep.subr.bf16.mxu0 0
        %920 = vmatpush1.bf16.xpose.msra.mxu0 0
        %921 = vmatprep.subr.bf16.mxu0 0
        %922 = vmatpush1.bf16.xpose.msra.mxu0 0
        %923 = vmatprep.mubr.bf16.mxu0 0
        %924 = vmatmul.mubr.bf16.gmra.mrb[0].mxu0 %v824
        %v925 = vpop.f32.mrb[0].mxu0
        %v926 = vadd.f32 0.0, %v925
        %v927 = vpop.f32.mrb[0].mxu0
        %v928 = vpop.f32.mrb[0].mxu0
        %v929 = vadd.f32 0.0, %v928
        %v930 = vpop.f32.mrb[0].mxu0
        %931 = vdwg.mxu0
        %v932 = vmul.f32 %v926, 0.03125
        %v933 = vmul.f32 %v929, 0.03125
        %v934 = vld [vmem:[%s9] sm:$0xff]
        %v935 = vld [vmem:[%s9 + $0x8] sm:$0xff]
        %v936 = vadd.f32 %v932, %v934
        %v937 = vadd.f32 %v933, %v935
        %vm938 = vcmask 523264
        %v939 = vsel %vm938, %v936, -inf
        %940 = vmax.xlane.f32.xlu0 %v939
        %v941 = vpop.xlane.xlu0 %940
        %v942 = vsel %vm938, %v937, -inf
        %943 = vmax.xlane.f32.xlu0 %v942
        %v944 = vpop.xlane.xlu0 %943
        %v945 = vsub.f32 %v936, %v941
        %v946 = vsub.f32 %v937, %v944
        %v947 = vmul.f32 %v945, 1.442695
        %v948 = vpow.pop %v947
        %v949 = vmul.f32 %v946, 1.442695
        %v950 = vpow.pop %v949
        %v951 = vpack.c.bf16 %v950, %v948
        %v952 = vld [vmem:[#allocation3] sm:$0xff]
        %v953 = vld [vmem:[#allocation3 + $0x8] sm:$0xff]
        %v954 = vld [vmem:[#allocation3 + $0x10] sm:$0xff]
        %v955 = vld [vmem:[#allocation3 + $0x18] sm:$0xff]
        %v956 = vld [vmem:[#allocation3 + $0x20] sm:$0xff]
        %v957 = vld [vmem:[#allocation3 + $0x28] sm:$0xff]
        %v958 = vld [vmem:[#allocation3 + $0x30] sm:$0xff]
        %v959 = vld [vmem:[#allocation3 + $0x38] sm:$0xff]
        %v961 = vsel %vm938, %v951, 0
        %963 = vmatprep.subr.bf16.mxu0 %v953
        %964 = vmatpush1.bf16.msra.mxu0 %v952
        %965 = vmatprep.subr.bf16.mxu0 %v955
        %966 = vmatpush1.bf16.msra.mxu0 %v954
        %967 = vmatprep.subr.bf16.mxu0 %v957
        %968 = vmatpush1.bf16.msra.mxu0 %v956
        %969 = vmatprep.subr.bf16.mxu0 %v959
        %970 = vmatpush1.bf16.msra.mxu0 %v958
        %971 = vmatprep.subr.bf16.mxu0 0
        %972 = vmatpush1.bf16.msra.mxu0 0
        %973 = vmatprep.subr.bf16.mxu0 0
        %974 = vmatpush1.bf16.msra.mxu0 0
        %975 = vmatprep.subr.bf16.mxu0 0
        %976 = vmatpush1.bf16.msra.mxu0 0
        %977 = vmatprep.subr.bf16.mxu0 0
        %978 = vmatpush1.bf16.msra.mxu0 0
        %979 = vmatprep.subr.bf16.mxu0 0
        %980 = vmatpush1.bf16.msra.mxu0 0
        %981 = vmatprep.subr.bf16.mxu0 0
        %982 = vmatpush1.bf16.msra.mxu0 0
        %983 = vmatprep.subr.bf16.mxu0 0
        %984 = vmatpush1.bf16.msra.mxu0 0
        %985 = vmatprep.subr.bf16.mxu0 0
        %986 = vmatpush1.bf16.msra.mxu0 0
        %987 = vmatprep.subr.bf16.mxu0 0
        %988 = vmatpush1.bf16.msra.mxu0 0
        %989 = vmatprep.subr.bf16.mxu0 0
        %990 = vmatpush1.bf16.msra.mxu0 0
        %991 = vmatprep.subr.bf16.mxu0 0
        %992 = vmatpush1.bf16.msra.mxu0 0
        %993 = vmatprep.subr.bf16.mxu0 0
        %994 = vmatpush1.bf16.msra.mxu0 0
        %995 = vmatprep.mubr.bf16.mxu0 0
        %996 = vmatmul.mubr.bf16.gmra.mrb[0].mxu0 %v961
        %v997 = vpop.f32.mrb[0].mxu0
        %v998 = vadd.f32 0.0, %v997
        %v999 = vpop.f32.mrb[0].mxu0
        %v1000 = vadd.f32 0.0, %v999
        %v1001 = vpop.f32.mrb[0].mxu0
        %v1002 = vadd.f32 0.0, %v1001
        %v1003 = vpop.f32.mrb[0].mxu0
        %v1004 = vadd.f32 0.0, %v1003
        %1005 = vdwg.mxu0
        %v1006 = vrcp.pop %v1000
        %v1007 = vrcp.pop %v1004
        %v1008 = vmul.f32 %v998, %v1006
        %v1009 = vmul.f32 %v1002, %v1007
        %v1010 = vld [vmem:[%s11] sm:$0x1]
        %v1011 = vpack.c.bf16 %v1009, %v1008
        %v1012 = vld [vmem:[%s10] sm:$0xf]
        %v1013 = vld [vmem:[%s10 + $0x4] sm:$0xf]
        %v1014 = vld [vmem:[%s10 + $0x8] sm:$0xf]
        %v1015 = vld [vmem:[%s10 + $0xc] sm:$0xf]
        %v1016 = vld [vmem:[%s10 + $0x10] sm:$0xf]
        %v1017 = vld [vmem:[%s10 + $0x14] sm:$0xf]
        %v1018 = vld [vmem:[%s10 + $0x18] sm:$0xf]
        %v1019 = vld [vmem:[%s10 + $0x1c] sm:$0xf]
        %v1020 = vld [vmem:[%s10 + $0x20] sm:$0xf]
        %v1021 = vld [vmem:[%s10 + $0x24] sm:$0xf]
        %v1022 = vld [vmem:[%s10 + $0x28] sm:$0xf]
        %v1023 = vld [vmem:[%s10 + $0x2c] sm:$0xf]
        %v1024 = vld [vmem:[%s10 + $0x30] sm:$0xf]
        %v1025 = vld [vmem:[%s10 + $0x34] sm:$0xf]
        %v1026 = vld [vmem:[%s10 + $0x38] sm:$0xf]
        %v1027 = vld [vmem:[%s10 + $0x3c] sm:$0xf]
        %v1029 = vlaneseq
        %v1030 = vshrl.u32 %v1029, 7
        %v1031 = vsub.s32 0, %v1030
        %v1032 = vrot.slane %v1010, %v1031
        %v1050 = vunpack.c.l.b16 %v1012
        %v1051 = vunpack.c.l.b16 %v1013
        %v1052 = vunpack.c.l.b16 %v1014
        %v1053 = vunpack.c.l.b16 %v1015
        %v1054 = vunpack.c.l.b16 %v1016
        %v1055 = vunpack.c.l.b16 %v1017
        %v1056 = vunpack.c.l.b16 %v1018
        %v1057 = vunpack.c.l.b16 %v1019
        %v1058 = vunpack.c.l.b16 %v1020
        %v1059 = vunpack.c.l.b16 %v1021
        %v1060 = vunpack.c.l.b16 %v1022
        %v1061 = vunpack.c.l.b16 %v1023
        %v1062 = vunpack.c.l.b16 %v1024
        %v1063 = vunpack.c.l.b16 %v1025
        %v1064 = vunpack.c.l.b16 %v1026
        %v1065 = vunpack.c.l.b16 %v1027
        %v1066 = vpack.c.b16 %v1051, %v1050
        %v1067 = vpack.c.b16 %v1053, %v1052
        %v1068 = vpack.c.b16 %v1055, %v1054
        %v1069 = vpack.c.b16 %v1057, %v1056
        %v1070 = vpack.c.b16 %v1059, %v1058
        %v1071 = vpack.c.b16 %v1061, %v1060
        %v1072 = vpack.c.b16 %v1063, %v1062
        %v1073 = vpack.c.b16 %v1065, %v1064
        %1082 = vmatprep.subr.bf16.mxu0 0
        %1083 = vmatpush1.bf16.msra.mxu0 %v1066
        %1084 = vmatprep.subr.bf16.mxu0 0
        %1085 = vmatpush1.bf16.msra.mxu0 %v1067
        %1086 = vmatprep.subr.bf16.mxu0 0
        %1087 = vmatpush1.bf16.msra.mxu0 %v1068
        %1088 = vmatprep.subr.bf16.mxu0 0
        %1089 = vmatpush1.bf16.msra.mxu0 %v1069
        %1090 = vmatprep.subr.bf16.mxu0 0
        %1091 = vmatpush1.bf16.msra.mxu0 %v1070
        %1092 = vmatprep.subr.bf16.mxu0 0
        %1093 = vmatpush1.bf16.msra.mxu0 %v1071
        %1094 = vmatprep.subr.bf16.mxu0 0
        %1095 = vmatpush1.bf16.msra.mxu0 %v1072
        %1096 = vmatprep.subr.bf16.mxu0 0
        %1097 = vmatpush1.bf16.msra.mxu0 %v1073
        %1098 = vmatprep.subr.bf16.mxu0 0
        %1099 = vmatpush1.bf16.msra.mxu0 0
        %1100 = vmatprep.subr.bf16.mxu0 0
        %1101 = vmatpush1.bf16.msra.mxu0 0
        %1102 = vmatprep.subr.bf16.mxu0 0
        %1103 = vmatpush1.bf16.msra.mxu0 0
        %1104 = vmatprep.subr.bf16.mxu0 0
        %1105 = vmatpush1.bf16.msra.mxu0 0
        %1106 = vmatprep.subr.bf16.mxu0 0
        %1107 = vmatpush1.bf16.msra.mxu0 0
        %1108 = vmatprep.subr.bf16.mxu0 0
        %1109 = vmatpush1.bf16.msra.mxu0 0
        %1110 = vmatprep.subr.bf16.mxu0 0
        %1111 = vmatpush1.bf16.msra.mxu0 0
        %1112 = vmatprep.subr.bf16.mxu0 0
        %1113 = vmatpush1.bf16.msra.mxu0 0
        %1114 = vmatprep.mubr.bf16.mxu0 0
        %1115 = vmatmul.mubr.bf16.gmra.mrb[0].mxu0 %v1011
        %v1116 = vpop.f32.mrb[0].mxu0
        %v1117 = vadd.f32 %v1032, %v1116
        %v1118 = vpop.f32.mrb[0].mxu0
        %v1119 = vpop.f32.mrb[0].mxu0
        %v1120 = vadd.f32 %v1032, %v1119
        %v1121 = vpop.f32.mrb[0].mxu0
        %1122 = vdwg.mxu0
        %v1123 = vadd.f32 %v576, %v1117
        %v1124 = vadd.f32 %v577, %v1120
        %v1125 = vld [vmem:[%s12] sm:$0x1]
        %v1126 = vld [vmem:[%s13] sm:$0x1]
        %1127 = vadd.xlane.f32.xlu0 %v1123
        %v1128 = vpop.xlane.xlu0 %1127
        %1129 = vadd.xlane.f32.xlu0 %v1124
        %v1130 = vpop.xlane.xlu0 %1129
        %v1131 = vmul.f32 %v1128, %v584
        %v1132 = vmul.f32 %v1130, %v584
        %v1133 = vsub.f32 %v1123, %v1131
        %v1134 = vsub.f32 %v1124, %v1132
        %v1135 = vmul.f32 %v1133, %v1133
        %v1136 = vmul.f32 %v1134, %v1134
        %1137 = vadd.xlane.f32.xlu0 %v1135
        %v1138 = vpop.xlane.xlu0 %1137
        %1139 = vadd.xlane.f32.xlu0 %v1136
        %v1140 = vpop.xlane.xlu0 %1139
        %v1141 = vmul.f32 %v1138, %v584
        %v1142 = vmul.f32 %v1140, %v584
        %v1143 = vadd.f32 %v1141, 1e-05
        %v1144 = vadd.f32 %v1142, 1e-05
        %v1145 = vrsqrt.pop %v1143
        %v1146 = vrsqrt.pop %v1144
        %v1147 = vmul.f32 %v1133, %v1145
        %v1148 = vmul.f32 %v1134, %v1146
        %v1150 = vlaneseq
        %v1151 = vshrl.u32 %v1150, 7
        %v1152 = vsub.s32 0, %v1151
        %v1153 = vrot.slane %v1125, %v1152
        %v1155 = vmul.f32 %v1147, %v1153
        %v1156 = vmul.f32 %v1148, %v1153
        %v1158 = vlaneseq
        %v1159 = vshrl.u32 %v1158, 7
        %v1160 = vsub.s32 0, %v1159
        %v1161 = vrot.slane %v1126, %v1160
        %v1163 = vadd.f32 %v1155, %v1161
        %v1164 = vadd.f32 %v1156, %v1161
        %v1165 = vld [vmem:[%s15] sm:$0xf]
        %v1166 = vpack.c.bf16 %v1164, %v1163
        %v1167 = vld [vmem:[%s14] sm:$0xff]
        %v1168 = vld [vmem:[%s14 + $0x8] sm:$0xff]
        %v1169 = vld [vmem:[%s14 + $0x10] sm:$0xff]
        %v1170 = vld [vmem:[%s14 + $0x18] sm:$0xff]
        %v1171 = vld [vmem:[%s14 + $0x20] sm:$0xff]
        %v1172 = vld [vmem:[%s14 + $0x28] sm:$0xff]
        %v1173 = vld [vmem:[%s14 + $0x30] sm:$0xff]
        %v1174 = vld [vmem:[%s14 + $0x38] sm:$0xff]
        %v1175 = vld [vmem:[%s14 + $0x40] sm:$0xff]
        %v1176 = vld [vmem:[%s14 + $0x48] sm:$0xff]
        %v1177 = vld [vmem:[%s14 + $0x50] sm:$0xff]
        %v1178 = vld [vmem:[%s14 + $0x58] sm:$0xff]
        %v1179 = vld [vmem:[%s14 + $0x60] sm:$0xff]
        %v1180 = vld [vmem:[%s14 + $0x68] sm:$0xff]
        %v1181 = vld [vmem:[%s14 + $0x70] sm:$0xff]
        %v1182 = vld [vmem:[%s14 + $0x78] sm:$0xff]
        %v1183 = vld [vmem:[%s14 + $0x80] sm:$0xff]
        %v1184 = vld [vmem:[%s14 + $0x88] sm:$0xff]
        %v1185 = vld [vmem:[%s14 + $0x90] sm:$0xff]
        %v1186 = vld [vmem:[%s14 + $0x98] sm:$0xff]
        %v1187 = vld [vmem:[%s14 + $0xa0] sm:$0xff]
        %v1188 = vld [vmem:[%s14 + $0xa8] sm:$0xff]
        %v1189 = vld [vmem:[%s14 + $0xb0] sm:$0xff]
        %v1190 = vld [vmem:[%s14 + $0xb8] sm:$0xff]
        %v1191 = vld [vmem:[%s14 + $0xc0] sm:$0xff]
        %v1192 = vld [vmem:[%s14 + $0xc8] sm:$0xff]
        %v1193 = vld [vmem:[%s14 + $0xd0] sm:$0xff]
        %v1194 = vld [vmem:[%s14 + $0xd8] sm:$0xff]
        %v1195 = vld [vmem:[%s14 + $0xe0] sm:$0xff]
        %v1196 = vld [vmem:[%s14 + $0xe8] sm:$0xff]
        %v1197 = vld [vmem:[%s14 + $0xf0] sm:$0xff]
        %v1198 = vld [vmem:[%s14 + $0xf8] sm:$0xff]
        %v1200 = vlaneseq
        %v1201 = vshrl.u32 %v1200, 7
        %v1202 = vsub.s32 0, %v1201
        %v1203 = vrot.slane %v1165, %v1202
        %v1204 = vlaneseq
        %v1205 = vshrl.u32 %v1204, 7
        %v1206 = vsub.s32 1, %v1205
        %v1207 = vrot.slane %v1165, %v1206
        %v1208 = vlaneseq
        %v1209 = vshrl.u32 %v1208, 7
        %v1210 = vsub.s32 2, %v1209
        %v1211 = vrot.slane %v1165, %v1210
        %v1212 = vlaneseq
        %v1213 = vshrl.u32 %v1212, 7
        %v1214 = vsub.s32 3, %v1213
        %v1215 = vrot.slane %v1165, %v1214
        %v1252 = vunpack.c.l.b16 %v1167
        %v1253 = vunpack.c.h.b16 %v1167
        %v1254 = vunpack.c.l.b16 %v1168
        %v1255 = vunpack.c.h.b16 %v1168
        %v1256 = vunpack.c.l.b16 %v1169
        %v1257 = vunpack.c.h.b16 %v1169
        %v1258 = vunpack.c.l.b16 %v1170
        %v1259 = vunpack.c.h.b16 %v1170
        %v1260 = vunpack.c.l.b16 %v1171
        %v1261 = vunpack.c.h.b16 %v1171
        %v1262 = vunpack.c.l.b16 %v1172
        %v1263 = vunpack.c.h.b16 %v1172
        %v1264 = vunpack.c.l.b16 %v1173
        %v1265 = vunpack.c.h.b16 %v1173
        %v1266 = vunpack.c.l.b16 %v1174
        %v1267 = vunpack.c.h.b16 %v1174
        %v1268 = vunpack.c.l.b16 %v1175
        %v1269 = vunpack.c.h.b16 %v1175
        %v1270 = vunpack.c.l.b16 %v1176
        %v1271 = vunpack.c.h.b16 %v1176
        %v1272 = vunpack.c.l.b16 %v1177
        %v1273 = vunpack.c.h.b16 %v1177
        %v1274 = vunpack.c.l.b16 %v1178
        %v1275 = vunpack.c.h.b16 %v1178
        %v1276 = vunpack.c.l.b16 %v1179
        %v1277 = vunpack.c.h.b16 %v1179
        %v1278 = vunpack.c.l.b16 %v1180
        %v1279 = vunpack.c.h.b16 %v1180
        %v1280 = vunpack.c.l.b16 %v1181
        %v1281 = vunpack.c.h.b16 %v1181
        %v1282 = vunpack.c.l.b16 %v1182
        %v1283 = vunpack.c.h.b16 %v1182
        %v1284 = vunpack.c.l.b16 %v1183
        %v1285 = vunpack.c.h.b16 %v1183
        %v1286 = vunpack.c.l.b16 %v1184
        %v1287 = vunpack.c.h.b16 %v1184
        %v1288 = vunpack.c.l.b16 %v1185
        %v1289 = vunpack.c.h.b16 %v1185
        %v1290 = vunpack.c.l.b16 %v1186
        %v1291 = vunpack.c.h.b16 %v1186
        %v1292 = vunpack.c.l.b16 %v1187
        %v1293 = vunpack.c.h.b16 %v1187
        %v1294 = vunpack.c.l.b16 %v1188
        %v1295 = vunpack.c.h.b16 %v1188
        %v1296 = vunpack.c.l.b16 %v1189
        %v1297 = vunpack.c.h.b16 %v1189
        %v1298 = vunpack.c.l.b16 %v1190
        %v1299 = vunpack.c.h.b16 %v1190
        %v1300 = vunpack.c.l.b16 %v1191
        %v1301 = vunpack.c.h.b16 %v1191
        %v1302 = vunpack.c.l.b16 %v1192
        %v1303 = vunpack.c.h.b16 %v1192
        %v1304 = vunpack.c.l.b16 %v1193
        %v1305 = vunpack.c.h.b16 %v1193
        %v1306 = vunpack.c.l.b16 %v1194
        %v1307 = vunpack.c.h.b16 %v1194
        %v1308 = vunpack.c.l.b16 %v1195
        %v1309 = vunpack.c.h.b16 %v1195
        %v1310 = vunpack.c.l.b16 %v1196
        %v1311 = vunpack.c.h.b16 %v1196
        %v1312 = vunpack.c.l.b16 %v1197
        %v1313 = vunpack.c.h.b16 %v1197
        %v1314 = vunpack.c.l.b16 %v1198
        %v1315 = vunpack.c.h.b16 %v1198
        %v1316 = vpack.c.b16 %v1256, %v1252
        %v1317 = vpack.c.b16 %v1257, %v1253
        %v1318 = vpack.c.b16 %v1258, %v1254
        %v1319 = vpack.c.b16 %v1259, %v1255
        %v1320 = vpack.c.b16 %v1264, %v1260
        %v1321 = vpack.c.b16 %v1265, %v1261
        %v1322 = vpack.c.b16 %v1266, %v1262
        %v1323 = vpack.c.b16 %v1267, %v1263
        %v1324 = vpack.c.b16 %v1272, %v1268
        %v1325 = vpack.c.b16 %v1273, %v1269
        %v1326 = vpack.c.b16 %v1274, %v1270
        %v1327 = vpack.c.b16 %v1275, %v1271
        %v1328 = vpack.c.b16 %v1280, %v1276
        %v1329 = vpack.c.b16 %v1281, %v1277
        %v1330 = vpack.c.b16 %v1282, %v1278
        %v1331 = vpack.c.b16 %v1283, %v1279
        %v1332 = vpack.c.b16 %v1288, %v1284
        %v1333 = vpack.c.b16 %v1289, %v1285
        %v1334 = vpack.c.b16 %v1290, %v1286
        %v1335 = vpack.c.b16 %v1291, %v1287
        %v1336 = vpack.c.b16 %v1296, %v1292
        %v1337 = vpack.c.b16 %v1297, %v1293
        %v1338 = vpack.c.b16 %v1298, %v1294
        %v1339 = vpack.c.b16 %v1299, %v1295
        %v1340 = vpack.c.b16 %v1304, %v1300
        %v1341 = vpack.c.b16 %v1305, %v1301
        %v1342 = vpack.c.b16 %v1306, %v1302
        %v1343 = vpack.c.b16 %v1307, %v1303
        %v1344 = vpack.c.b16 %v1312, %v1308
        %v1345 = vpack.c.b16 %v1313, %v1309
        %v1346 = vpack.c.b16 %v1314, %v1310
        %v1347 = vpack.c.b16 %v1315, %v1311
        %1380 = vmatprep.subr.bf16.mxu0 %v1317
        %1381 = vmatpush1.bf16.msra.mxu0 %v1316
        %1382 = vmatprep.subr.bf16.mxu0 %v1321
        %1383 = vmatpush1.bf16.msra.mxu0 %v1320
        %1384 = vmatprep.subr.bf16.mxu0 %v1325
        %1385 = vmatpush1.bf16.msra.mxu0 %v1324
        %1386 = vmatprep.subr.bf16.mxu0 %v1329
        %1387 = vmatpush1.bf16.msra.mxu0 %v1328
        %1388 = vmatprep.subr.bf16.mxu0 %v1333
        %1389 = vmatpush1.bf16.msra.mxu0 %v1332
        %1390 = vmatprep.subr.bf16.mxu0 %v1337
        %1391 = vmatpush1.bf16.msra.mxu0 %v1336
        %1392 = vmatprep.subr.bf16.mxu0 %v1341
        %1393 = vmatpush1.bf16.msra.mxu0 %v1340
        %1394 = vmatprep.subr.bf16.mxu0 %v1345
        %1395 = vmatpush1.bf16.msra.mxu0 %v1344
        %1396 = vmatprep.subr.bf16.mxu0 0
        %1397 = vmatpush1.bf16.msra.mxu0 0
        %1398 = vmatprep.subr.bf16.mxu0 0
        %1399 = vmatpush1.bf16.msra.mxu0 0
        %1400 = vmatprep.subr.bf16.mxu0 0
        %1401 = vmatpush1.bf16.msra.mxu0 0
        %1402 = vmatprep.subr.bf16.mxu0 0
        %1403 = vmatpush1.bf16.msra.mxu0 0
        %1404 = vmatprep.subr.bf16.mxu0 0
        %1405 = vmatpush1.bf16.msra.mxu0 0
        %1406 = vmatprep.subr.bf16.mxu0 0
        %1407 = vmatpush1.bf16.msra.mxu0 0
        %1408 = vmatprep.subr.bf16.mxu0 0
        %1409 = vmatpush1.bf16.msra.mxu0 0
        %1410 = vmatprep.subr.bf16.mxu0 0
        %1411 = vmatpush1.bf16.msra.mxu0 0
        %1412 = vmatprep.mubr.bf16.mxu0 0
        %1413 = vmatmul.mubr.bf16.gmra.mrb[0].mxu0 %v1166
        %v1414 = vpop.f32.mrb[0].mxu0
        %v1415 = vadd.f32 %v1203, %v1414
        %v1416 = vpop.f32.mrb[0].mxu0
        %v1417 = vadd.f32 %v1207, %v1416
        %v1418 = vpop.f32.mrb[0].mxu0
        %v1419 = vadd.f32 %v1203, %v1418
        %v1420 = vpop.f32.mrb[0].mxu0
        %v1421 = vadd.f32 %v1207, %v1420
        %1422 = vdwg.mxu0
        %1423 = vmatprep.subr.bf16.mxu0 %v1319
        %1424 = vmatpush1.bf16.msra.mxu0 %v1318
        %1425 = vmatprep.subr.bf16.mxu0 %v1323
        %1426 = vmatpush1.bf16.msra.mxu0 %v1322
        %1427 = vmatprep.subr.bf16.mxu0 %v1327
        %1428 = vmatpush1.bf16.msra.mxu0 %v1326
        %1429 = vmatprep.subr.bf16.mxu0 %v1331
        %1430 = vmatpush1.bf16.msra.mxu0 %v1330
        %1431 = vmatprep.subr.bf16.mxu0 %v1335
        %1432 = vmatpush1.bf16.msra.mxu0 %v1334
        %1433 = vmatprep.subr.bf16.mxu0 %v1339
        %1434 = vmatpush1.bf16.msra.mxu0 %v1338
        %1435 = vmatprep.subr.bf16.mxu0 %v1343
        %1436 = vmatpush1.bf16.msra.mxu0 %v1342
        %1437 = vmatprep.subr.bf16.mxu0 %v1347
        %1438 = vmatpush1.bf16.msra.mxu0 %v1346
        %1439 = vmatprep.subr.bf16.mxu0 0
        %1440 = vmatpush1.bf16.msra.mxu0 0
        %1441 = vmatprep.subr.bf16.mxu0 0
        %1442 = vmatpush1.bf16.msra.mxu0 0
        %1443 = vmatprep.subr.bf16.mxu0 0
        %1444 = vmatpush1.bf16.msra.mxu0 0
        %1445 = vmatprep.subr.bf16.mxu0 0
        %1446 = vmatpush1.bf16.msra.mxu0 0
        %1447 = vmatprep.subr.bf16.mxu0 0
        %1448 = vmatpush1.bf16.msra.mxu0 0
        %1449 = vmatprep.subr.bf16.mxu0 0
        %1450 = vmatpush1.bf16.msra.mxu0 0
        %1451 = vmatprep.subr.bf16.mxu0 0
        %1452 = vmatpush1.bf16.msra.mxu0 0
        %1453 = vmatprep.subr.bf16.mxu0 0
        %1454 = vmatpush1.bf16.msra.mxu0 0
        %1455 = vmatprep.mubr.bf16.mxu0 0
        %1456 = vmatmul.mubr.bf16.gmra.mrb[0].mxu0 %v1166
        %v1457 = vpop.f32.mrb[0].mxu0
        %v1458 = vadd.f32 %v1211, %v1457
        %v1459 = vpop.f32.mrb[0].mxu0
        %v1460 = vadd.f32 %v1215, %v1459
        %v1461 = vpop.f32.mrb[0].mxu0
        %v1462 = vadd.f32 %v1211, %v1461
        %v1463 = vpop.f32.mrb[0].mxu0
        %v1464 = vadd.f32 %v1215, %v1463
        %1465 = vdwg.mxu0
        %v1466 = vmul.f32 %v1415, -1.702
        %v1467 = vmul.f32 %v1417, -1.702
        %v1468 = vmul.f32 %v1419, -1.702
        %v1469 = vmul.f32 %v1421, -1.702
        %v1470 = vmul.f32 %v1466, 1.442695
        %v1471 = vpow.pop %v1470
        %v1472 = vmul.f32 %v1467, 1.442695
        %v1473 = vpow.pop %v1472
        %v1474 = vmul.f32 %v1468, 1.442695
        %v1475 = vpow.pop %v1474
        %v1476 = vmul.f32 %v1469, 1.442695
        %v1477 = vpow.pop %v1476
        %v1478 = vadd.f32 %v1471, 1.0
        %v1479 = vadd.f32 %v1473, 1.0
        %v1480 = vadd.f32 %v1475, 1.0
        %v1481 = vadd.f32 %v1477, 1.0
        %v1482 = vrcp.pop %v1478
        %v1483 = vrcp.pop %v1479
        %v1484 = vrcp.pop %v1480
        %v1485 = vrcp.pop %v1481
        %v1486 = vmul.f32 %v1415, %v1482
        %v1487 = vmul.f32 %v1417, %v1483
        %v1488 = vmul.f32 %v1419, %v1484
        %v1489 = vmul.f32 %v1421, %v1485
        %v1490 = vadd.f32 %v1458, 1.0
        %v1491 = vadd.f32 %v1460, 1.0
        %v1492 = vadd.f32 %v1462, 1.0
        %v1493 = vadd.f32 %v1464, 1.0
        %v1494 = vmul.f32 %v1486, %v1490
        %v1495 = vmul.f32 %v1487, %v1491
        %v1496 = vmul.f32 %v1488, %v1492
        %v1497 = vmul.f32 %v1489, %v1493
        %v1498 = vld [vmem:[%s17] sm:$0x1]
        %v1499 = vpack.c.bf16 %v1496, %v1494
        %v1500 = vpack.c.bf16 %v1497, %v1495
        %v1501 = vld [vmem:[%s16] sm:$0xf]
        %v1502 = vld [vmem:[%s16 + $0x4] sm:$0xf]
        %v1503 = vld [vmem:[%s16 + $0x8] sm:$0xf]
        %v1504 = vld [vmem:[%s16 + $0xc] sm:$0xf]
        %v1505 = vld [vmem:[%s16 + $0x10] sm:$0xf]
        %v1506 = vld [vmem:[%s16 + $0x14] sm:$0xf]
        %v1507 = vld [vmem:[%s16 + $0x18] sm:$0xf]
        %v1508 = vld [vmem:[%s16 + $0x1c] sm:$0xf]
        %v1509 = vld [vmem:[%s16 + $0x20] sm:$0xf]
        %v1510 = vld [vmem:[%s16 + $0x24] sm:$0xf]
        %v1511 = vld [vmem:[%s16 + $0x28] sm:$0xf]
        %v1512 = vld [vmem:[%s16 + $0x2c] sm:$0xf]
        %v1513 = vld [vmem:[%s16 + $0x30] sm:$0xf]
        %v1514 = vld [vmem:[%s16 + $0x34] sm:$0xf]
        %v1515 = vld [vmem:[%s16 + $0x38] sm:$0xf]
        %v1516 = vld [vmem:[%s16 + $0x3c] sm:$0xf]
        %v1517 = vld [vmem:[%s16 + $0x40] sm:$0xf]
        %v1518 = vld [vmem:[%s16 + $0x44] sm:$0xf]
        %v1519 = vld [vmem:[%s16 + $0x48] sm:$0xf]
        %v1520 = vld [vmem:[%s16 + $0x4c] sm:$0xf]
        %v1521 = vld [vmem:[%s16 + $0x50] sm:$0xf]
        %v1522 = vld [vmem:[%s16 + $0x54] sm:$0xf]
        %v1523 = vld [vmem:[%s16 + $0x58] sm:$0xf]
        %v1524 = vld [vmem:[%s16 + $0x5c] sm:$0xf]
        %v1525 = vld [vmem:[%s16 + $0x60] sm:$0xf]
        %v1526 = vld [vmem:[%s16 + $0x64] sm:$0xf]
        %v1527 = vld [vmem:[%s16 + $0x68] sm:$0xf]
        %v1528 = vld [vmem:[%s16 + $0x6c] sm:$0xf]
        %v1529 = vld [vmem:[%s16 + $0x70] sm:$0xf]
        %v1530 = vld [vmem:[%s16 + $0x74] sm:$0xf]
        %v1531 = vld [vmem:[%s16 + $0x78] sm:$0xf]
        %v1532 = vld [vmem:[%s16 + $0x7c] sm:$0xf]
        %v1534 = vlaneseq
        %v1535 = vshrl.u32 %v1534, 7
        %v1536 = vsub.s32 0, %v1535
        %v1537 = vrot.slane %v1498, %v1536
        %v1571 = vunpack.c.l.b16 %v1501
        %v1572 = vunpack.c.l.b16 %v1502
        %v1573 = vunpack.c.l.b16 %v1503
        %v1574 = vunpack.c.l.b16 %v1504
        %v1575 = vunpack.c.l.b16 %v1505
        %v1576 = vunpack.c.l.b16 %v1506
        %v1577 = vunpack.c.l.b16 %v1507
        %v1578 = vunpack.c.l.b16 %v1508
        %v1579 = vunpack.c.l.b16 %v1509
        %v1580 = vunpack.c.l.b16 %v1510
        %v1581 = vunpack.c.l.b16 %v1511
        %v1582 = vunpack.c.l.b16 %v1512
        %v1583 = vunpack.c.l.b16 %v1513
        %v1584 = vunpack.c.l.b16 %v1514
        %v1585 = vunpack.c.l.b16 %v1515
        %v1586 = vunpack.c.l.b16 %v1516
        %v1587 = vunpack.c.l.b16 %v1517
        %v1588 = vunpack.c.l.b16 %v1518
        %v1589 = vunpack.c.l.b16 %v1519
        %v1590 = vunpack.c.l.b16 %v1520
        %v1591 = vunpack.c.l.b16 %v1521
        %v1592 = vunpack.c.l.b16 %v1522
        %v1593 = vunpack.c.l.b16 %v1523
        %v1594 = vunpack.c.l.b16 %v1524
        %v1595 = vunpack.c.l.b16 %v1525
        %v1596 = vunpack.c.l.b16 %v1526
        %v1597 = vunpack.c.l.b16 %v1527
        %v1598 = vunpack.c.l.b16 %v1528
        %v1599 = vunpack.c.l.b16 %v1529
        %v1600 = vunpack.c.l.b16 %v1530
        %v1601 = vunpack.c.l.b16 %v1531
        %v1602 = vunpack.c.l.b16 %v1532
        %v1603 = vpack.c.b16 %v1572, %v1571
        %v1604 = vpack.c.b16 %v1574, %v1573
        %v1605 = vpack.c.b16 %v1576, %v1575
        %v1606 = vpack.c.b16 %v1578, %v1577
        %v1607 = vpack.c.b16 %v1580, %v1579
        %v1608 = vpack.c.b16 %v1582, %v1581
        %v1609 = vpack.c.b16 %v1584, %v1583
        %v1610 = vpack.c.b16 %v1586, %v1585
        %v1611 = vpack.c.b16 %v1588, %v1587
        %v1612 = vpack.c.b16 %v1590, %v1589
        %v1613 = vpack.c.b16 %v1592, %v1591
        %v1614 = vpack.c.b16 %v1594, %v1593
        %v1615 = vpack.c.b16 %v1596, %v1595
        %v1616 = vpack.c.b16 %v1598, %v1597
        %v1617 = vpack.c.b16 %v1600, %v1599
        %v1618 = vpack.c.b16 %v1602, %v1601
        %1635 = vmatprep.subr.bf16.mxu0 0
        %1636 = vmatpush1.bf16.msra.mxu0 %v1603
        %1637 = vmatprep.subr.bf16.mxu0 0
        %1638 = vmatpush1.bf16.msra.mxu0 %v1604
        %1639 = vmatprep.subr.bf16.mxu0 0
        %1640 = vmatpush1.bf16.msra.mxu0 %v1605
        %1641 = vmatprep.subr.bf16.mxu0 0
        %1642 = vmatpush1.bf16.msra.mxu0 %v1606
        %1643 = vmatprep.subr.bf16.mxu0 0
        %1644 = vmatpush1.bf16.msra.mxu0 %v1607
        %1645 = vmatprep.subr.bf16.mxu0 0
        %1646 = vmatpush1.bf16.msra.mxu0 %v1608
        %1647 = vmatprep.subr.bf16.mxu0 0
        %1648 = vmatpush1.bf16.msra.mxu0 %v1609
        %1649 = vmatprep.subr.bf16.mxu0 0
        %1650 = vmatpush1.bf16.msra.mxu0 %v1610
        %1651 = vmatprep.subr.bf16.mxu0 0
        %1652 = vmatpush1.bf16.msra.mxu0 %v1611
        %1653 = vmatprep.subr.bf16.mxu0 0
        %1654 = vmatpush1.bf16.msra.mxu0 %v1612
        %1655 = vmatprep.subr.bf16.mxu0 0
        %1656 = vmatpush1.bf16.msra.mxu0 %v1613
        %1657 = vmatprep.subr.bf16.mxu0 0
        %1658 = vmatpush1.bf16.msra.mxu0 %v1614
        %1659 = vmatprep.subr.bf16.mxu0 0
        %1660 = vmatpush1.bf16.msra.mxu0 %v1615
        %1661 = vmatprep.subr.bf16.mxu0 0
        %1662 = vmatpush1.bf16.msra.mxu0 %v1616
        %1663 = vmatprep.subr.bf16.mxu0 0
        %1664 = vmatpush1.bf16.msra.mxu0 %v1617
        %1665 = vmatprep.subr.bf16.mxu0 0
        %1666 = vmatpush1.bf16.msra.mxu0 %v1618
        %1667 = vmatprep.mubr.bf16.mxu0 %v1500
        %1668 = vmatmul.mubr.bf16.gmra.mrb[0].mxu0 %v1499
        %v1669 = vpop.f32.mrb[0].mxu0
        %v1670 = vadd.f32 %v1537, %v1669
        %v1671 = vpop.f32.mrb[0].mxu0
        %v1672 = vpop.f32.mrb[0].mxu0
        %v1673 = vadd.f32 %v1537, %v1672
        %v1674 = vpop.f32.mrb[0].mxu0
        %1675 = vdwg.mxu0
        %v1676 = vadd.f32 %v1123, %v1670
        %v1677 = vadd.f32 %v1124, %v1673
        %1678 = vst [vmem:[%s568] sm:$0xff] %v1676
        %1679 = vst [vmem:[%s568 + $0x8] sm:$0xff] %v1677
        %s1680 = sand.u32 %s423, 1
        %s1681 = scalar_lea.sflag [#allocation5], %s1680
        %s1682 = sand.u32 %s423, 1
        %s1683 = smul.addr %s1682, 16
        %s1684 = scalar_lea.vmem [#allocation4], %s1683
        // Predicated region
        $region93: #{decoder_layer.1} parent=91 // pred_check
          %p1685 = pneg %p433
        $region94: #{decoder_layer.1} parent=91 // pred_check_branch
          %1687 = sbr.rel (%p1685) target = $region96
        $region95: #{decoder_layer.1} parent=91 // pred_region
          %s1689 = ssub.s32 256, 256
          %1690 = vsyncadd %s1681, %s1689
          %s1691 = smul.addr %s32, 2
          %s1692 = smul.addr %s1691, 128
          %s1693 = scalar_lea.hbm %s18, %s1692
          %s1694 = sshll.u32 %s1684, 4
          %s1695 = int_to_ptr.vmem [resolvable:$true] %s1694
          %1700 = dma.vmem_to_hbm [thread:$0]  %s1695, 256, %s1693, %s1681, 128, 128, 8
        $region96: #{decoder_layer.1} parent=91 // pred_fallthru
          _
      $region92: #{decoder_layer.1} parent=5 // pred_fallthru
        _
      %p1701 = scmp.le.s32.totalorder 2, %s27
      // Predicated region
      $region97: #{decoder_layer.1} parent=5 // pred_check
        %p1702 = pneg %p1701
      $region98: #{decoder_layer.1} parent=5 // pred_check_branch
        %1704 = sbr.rel (%p1702) target = $region100
      $region99: #{decoder_layer.1} parent=5 // pred_region
        %s1705 = ssub.s32 %s27, 2
        // Predicated region
        $region101: #{decoder_layer.1} parent=99 // pred_check
          %p1706 = pneg %p439
        $region102: #{decoder_layer.1} parent=99 // pred_check_branch
          %1708 = sbr.rel (%p1706) target = $region104
        $region103: #{decoder_layer.1} parent=99 // pred_region
          %s1709 = sand.u32 %s424, 1
          %s1710 = scalar_lea.sflag [#allocation5], %s1709
          %s1711 = sand.u32 %s424, 1
          %s1712 = smul.addr %s1711, 16
          %s1713 = scalar_lea.vmem [#allocation4], %s1712
          %1714 = dma.done %s1710, 256
        $region104: #{decoder_layer.1} parent=99 // pred_fallthru
          _
      $region100: #{decoder_layer.1} parent=5 // pred_fallthru
        _
    $region6: #{decoder_layer.1} parent=1 // loop_footer
      %s31 = sadd.s32 1, %s27
    $region7: #{decoder_layer.1} parent=1 // loop_footer_branch
      %26 = sbr.rel target = $region3
    $region8: #{decoder_layer.1} parent=1 // loop_exit
      _
    %1715 = vsyncpa [#allocation5], 1
    %s1716 = scalar_lea.sflag [#allocation5], 1
    %1717 = vsyncpa %s1716, 1

</llo_original>
